<compile_context>
chip_gen: v6e
topology: v6e:2x2x1
jax: 0.10.0
libtpu: 0.0.40
codegen_flags: <defaults>
</compile_context>

<pallas_src>
import functools

import jax
import jax.numpy as jnp
from jax.experimental import pallas as pl
from jax.experimental.pallas import tpu as pltpu

LANE = 128
TM_TARGET = 1024          # row tile of the propagation matmul
TK_TARGET = 2048          # contraction tile (multiple of TM_TARGET)
VMEM_LIMIT_BYTES = 48 * 1024 * 1024   # <= ~48 MiB so v7x (64 MiB VMEM) keeps
                                      # full double buffering; fine on v5e/v6e.


# ----------------------------------------------------------------------------
# small helpers (padding / tile planning)
# ----------------------------------------------------------------------------
def _cdiv(a, b):
    return (a + b - 1) // b


def _round_up(x, m):
    return _cdiv(x, m) * m


def _pad2(x, shape):
    return jnp.pad(x, [(0, s - d) for d, s in zip(x.shape, shape)])


def _plan_dim(n):
    """Plan padding + tiling for a node-count dim.

    Returns (padded, row_tile, k_tile) where row_tile is used when this dim is
    the output-row axis and k_tile when it is the contraction axis.  Guarantees
    >= 2 row tiles whenever the dim is large enough (megacore / v7x 2-TC), and
    keeps the E slab in a single resident block whenever it fits one k tile.
    """
    if n <= LANE:
        return LANE, LANE, LANE
    if n <= TM_TARGET:
        half = _round_up(_cdiv(n, 2), LANE)
        p = 2 * half
        return p, half, p                      # 2 row tiles, E slab resident
    if n <= TK_TARGET:
        p = _round_up(n, TM_TARGET)
        return p, TM_TARGET, p                 # >=2 row tiles, E slab resident
    p = _round_up(n, TK_TARGET)                # TK_TARGET = 2*TM_TARGET
    return p, TM_TARGET, TK_TARGET


# ----------------------------------------------------------------------------
# Kernel 1: fused feature projection  y = emb + sum_k Linear_k(x_k)
# (features concatenated along the contraction dim -> single bf16 matmul)
# ----------------------------------------------------------------------------
def _feature_fuse_kernel(emb_ref, x_ref, w_ref, b_ref, o32_ref, obf_ref):
    y = (emb_ref[...]
         + jnp.dot(x_ref[...], w_ref[...], preferred_element_type=jnp.float32)
         + b_ref[...])
    o32_ref[...] = y                              # f32: layer-0 term of the mean
    obf_ref[...] = y.astype(jnp.bfloat16)         # bf16: first propagation operand


def pallas_fuse_features(emb_pad, features, layers, row_tile):
    """emb_pad: (Np, Dp) f32 padded base embedding. Returns (f32, bf16) fused embs."""
    np_rows, dp = emb_pad.shape
    xs, ws, bs = [], [], []
    for name in features:
        x = features[name]
        w, b = layers[name]                    # torch layout: w (D, F), b (D,)
        xs.append(x)
        ws.append(w.T)                         # (F, D)
        bs.append(b)
    x_cat = jnp.concatenate(xs, axis=1)        # (n, F_total)
    w_cat = jnp.concatenate(ws, axis=0)        # (F_total, D)
    b_sum = functools.reduce(lambda a, c: a + c, bs)

    fp = _round_up(x_cat.shape[1], LANE)
    # bf16 operands (halves HBM traffic, native MXU path); f32 accumulation.
    x_p = _pad2(x_cat.astype(jnp.float32), (np_rows, fp)).astype(jnp.bfloat16)
    w_p = _pad2(w_cat.astype(jnp.float32), (fp, dp)).astype(jnp.bfloat16)
    b_p = _pad2(b_sum.reshape(1, -1).astype(jnp.float32), (1, dp))

    tm = row_tile
    return pl.pallas_call(
        _feature_fuse_kernel,
        out_shape=(jax.ShapeDtypeStruct((np_rows, dp), jnp.float32),
                   jax.ShapeDtypeStruct((np_rows, dp), jnp.bfloat16)),
        grid=(np_rows // tm,),
        in_specs=[
            pl.BlockSpec((tm, dp), lambda i: (i, 0)),
            pl.BlockSpec((tm, fp), lambda i: (i, 0)),
            pl.BlockSpec((fp, dp), lambda i: (0, 0)),   # weights stay resident
            pl.BlockSpec((1, dp), lambda i: (0, 0)),
        ],
        out_specs=(
            pl.BlockSpec((tm, dp), lambda i: (i, 0)),
            pl.BlockSpec((tm, dp), lambda i: (i, 0)),
        ),
        input_output_aliases={0: 0},           # emb buffer reused for f32 output
        compiler_params=pltpu.CompilerParams(
            dimension_semantics=("parallel",),
            vmem_limit_bytes=VMEM_LIMIT_BYTES,
        ),
    )(emb_pad, x_p, w_p, b_p)


# ----------------------------------------------------------------------------
# Kernel 2: one propagation hop for one bipartite block, fused with the
# layer-sum accumulation (and the final 1/(L+1) mean on the last layer).
#   new_e = A @ e        (bf16 operands, f32 MXU accumulation)
#   sum'  = (layer_sum + new_e) * scale
# On the last layer the bf16 new_e output is omitted entirely.
# ----------------------------------------------------------------------------
def _prop_kernel(a_ref, e_ref, sum_ref, *rest, scale, emit_new_e):
    if emit_new_e:
        new_e_ref, sum_out_ref, acc_ref = rest
    else:
        sum_out_ref, acc_ref = rest

    k = pl.program_id(1)

    @pl.when(k == 0)
    def _():
        acc_ref[...] = jnp.zeros_like(acc_ref)

    acc_ref[...] += jnp.dot(a_ref[...], e_ref[...],
                            preferred_element_type=jnp.float32)

    @pl.when(k == pl.num_programs(1) - 1)
    def _():
        new_e = acc_ref[...]
        if emit_new_e:
            new_e_ref[...] = new_e.astype(new_e_ref.dtype)   # feeds next layer
        res = sum_ref[...] + new_e
        if scale != 1.0:
            res = res * scale                                # final mean fused in
        sum_out_ref[...] = res


def pallas_propagate_layer(a_bf, e_bf, layer_sum, *, scale, row_tile, k_tile,
                           emit_new_e):
    """a_bf: (Mp, Kp) bf16, e_bf: (Kp, Dp) bf16, layer_sum: (Mp, Dp) f32."""
    mp, kp = a_bf.shape
    kp2, dp = e_bf.shape
    assert kp == kp2 and mp % row_tile == 0 and kp % k_tile == 0
    tm, tk = row_tile, k_tile
    kernel = functools.partial(_prop_kernel, scale=float(scale),
                               emit_new_e=emit_new_e)

    if emit_new_e:
        out_shape = (jax.ShapeDtypeStruct((mp, dp), jnp.bfloat16),
                     jax.ShapeDtypeStruct((mp, dp), jnp.float32))
        out_specs = (pl.BlockSpec((tm, dp), lambda i, k: (i, 0)),
                     pl.BlockSpec((tm, dp), lambda i, k: (i, 0)))
        io_alias = {2: 1}        # layer_sum (input 2) updated in place (output 1)
    else:
        out_shape = jax.ShapeDtypeStruct((mp, dp), jnp.float32)
        out_specs = pl.BlockSpec((tm, dp), lambda i, k: (i, 0))
        io_alias = {2: 0}

    return pl.pallas_call(
        kernel,
        out_shape=out_shape,
        grid=(mp // tm, kp // tk),
        in_specs=[
            pl.BlockSpec((tm, tk), lambda i, k: (i, k)),   # adjacency block (bf16)
            pl.BlockSpec((tk, dp), lambda i, k: (k, 0)),   # embedding slab (bf16)
            pl.BlockSpec((tm, dp), lambda i, k: (i, 0)),   # running layer sum (f32)
        ],
        out_specs=out_specs,
        scratch_shapes=[pltpu.VMEM((tm, dp), jnp.float32)],
        input_output_aliases=io_alias,
        compiler_params=pltpu.CompilerParams(
            dimension_semantics=("parallel", "arbitrary"),
            vmem_limit_bytes=VMEM_LIMIT_BYTES,
        ),
    )(a_bf, e_bf, layer_sum)


# ----------------------------------------------------------------------------
# Adjacency preparation (done ONCE, outside/before the forward; cache across
# training steps — the graph is static, so the transpose cost amortizes away).
# ----------------------------------------------------------------------------
def prepare_adjacency(r_norm, n_users, m_items):
    nup, _, _ = _plan_dim(n_users)
    mip, _, _ = _plan_dim(m_items)
    r_pad = _pad2(r_norm.astype(jnp.float32), (nup, mip))
    r_bf = r_pad.astype(jnp.bfloat16)           # user-hop operand  (Nup, Mip)
    rt_bf = r_pad.T.astype(jnp.bfloat16)        # item-hop operand  (Mip, Nup)
    return r_bf, rt_bf


# ----------------------------------------------------------------------------
# LightGCN forward
# ----------------------------------------------------------------------------
def lightgcn_forward(user_emb, item_emb, r_bf, rt_bf, *, n_layers,
                     creator_features=None, creator_layers=None,
                     item_features=None, item_layers=None):
    n_users, d = user_emb.shape
    m_items = item_emb.shape[0]
    dp = _round_up(d, LANE)
    nup, tm_u, tk_u = _plan_dim(n_users)
    mip, tm_i, tk_i = _plan_dim(m_items)
    assert r_bf.shape == (nup, mip) and rt_bf.shape == (mip, nup)

    ue_pad = _pad2(user_emb.astype(jnp.float32), (nup, dp))
    ie_pad = _pad2(item_emb.astype(jnp.float32), (mip, dp))

    if creator_features:
        e_u, e_u_bf = pallas_fuse_features(ue_pad, creator_features,
                                           creator_layers, tm_u)
    else:
        e_u, e_u_bf = ue_pad, ue_pad.astype(jnp.bfloat16)
    if item_features:
        e_i, e_i_bf = pallas_fuse_features(ie_pad, item_features,
                                           item_layers, tm_i)
    else:
        e_i, e_i_bf = ie_pad, ie_pad.astype(jnp.bfloat16)

    sum_u, sum_i = e_u, e_i                      # layer-0 terms of the mean (f32)
    inv = 1.0 / float(n_layers + 1)
    for layer in range(n_layers):
        last = layer == n_layers - 1
        scale = inv if last else 1.0
        # both hops read the *previous* layer's embeddings (simultaneous update)
        out_u = pallas_propagate_layer(r_bf, e_i_bf, sum_u, scale=scale,
                                       row_tile=tm_u, k_tile=tk_i,
                                       emit_new_e=not last)
        out_i = pallas_propagate_layer(rt_bf, e_u_bf, sum_i, scale=scale,
                                       row_tile=tm_i, k_tile=tk_u,
                                       emit_new_e=not last)
        if last:
            sum_u, sum_i = out_u, out_i
        else:
            (e_u_bf, sum_u) = out_u
            (e_i_bf, sum_i) = out_i

    return sum_u[:n_users, :d], sum_i[:m_items, :d]


# ----------------------------------------------------------------------------
# Deterministic synthetic setup + pure-JAX reference
# ----------------------------------------------------------------------------
def build_normalized_bipartite(n_users, m_items):
    """Normalized user-item block R_hat = D_u^-1/2 R D_i^-1/2 (the only non-zero
    block of the symmetric normalized bipartite adjacency)."""
    u = jnp.arange(n_users)[:, None]
    i = jnp.arange(m_items)[None, :]
    r = ((u * 3 + i * 5) % 7 == 0).astype(jnp.float32)
    deg_u = r.sum(axis=1)
    deg_i = r.sum(axis=0)
    du = jnp.where(deg_u > 0, 1.0 / jnp.sqrt(deg_u), 0.0)
    di = jnp.where(deg_i > 0, 1.0 / jnp.sqrt(deg_i), 0.0)
    return r * du[:, None] * di[None, :]


def xavier_uniform(key, shape):
    fan_in, fan_out = shape[1], shape[0]
    limit = jnp.sqrt(6.0 / (fan_in + fan_out))
    return jax.random.uniform(key, shape, jnp.float32, -limit, limit)


def linear_params(key, in_dim, out_dim):
    kw, kb = jax.random.split(key)
    bound = 1.0 / jnp.sqrt(in_dim)
    w = jax.random.uniform(kw, (out_dim, in_dim), jnp.float32, -bound, bound)
    b = jax.random.uniform(kb, (out_dim,), jnp.float32, -bound, bound)
    return w, b


def reference_forward(user_emb, item_emb, r_norm, n_layers,
                      creator_features, creator_layers,
                      item_features, item_layers):
    def proc(feats, layers):
        tot = None
        for name, x in feats.items():
            w, b = layers[name]
            y = x @ w.T + b
            tot = y if tot is None else tot + y
        return tot

    ue = user_emb + proc(creator_features, creator_layers) if creator_features else user_emb
    ie = item_emb + proc(item_features, item_layers) if item_features else item_emb
    eu, ei = ue, ie
    acc_u, acc_i = eu, ei
    for _ in range(n_layers):
        nu = r_norm @ ei
        ni = r_norm.T @ eu
        eu, ei = nu, ni
        acc_u = acc_u + nu
        acc_i = acc_i + ni
    return acc_u / (n_layers + 1), acc_i / (n_layers + 1)


if __name__ == "__main__":
    n_users, m_items = 24, 40
    latent_dim = 32
    n_layers = 3
    creator_feat_dim = 16
    item_feat_dim = 8

    key = jax.random.PRNGKey(0)
    k1, k2, k3, k4, k5, k6 = jax.random.split(key, 6)

    user_emb = xavier_uniform(k1, (n_users, latent_dim))
    item_emb = xavier_uniform(k2, (m_items, latent_dim))

    creator_features = {
        "creator_meta": jax.random.normal(k3, (n_users, creator_feat_dim), jnp.float32)}
    item_features = {
        "item_meta": jax.random.normal(k4, (m_items, item_feat_dim), jnp.float32)}
    creator_layers = {"creator_meta": linear_params(k5, creator_feat_dim, latent_dim)}
    item_layers = {"item_meta": linear_params(k6, item_feat_dim, latent_dim)}

    r_norm = build_normalized_bipartite(n_users, m_items)

    # Adjacency (and its transpose) prepared once; cacheable across forwards.
    r_bf, rt_bf = prepare_adjacency(r_norm, n_users, m_items)

    fwd = jax.jit(functools.partial(lightgcn_forward, n_layers=n_layers))
    user_final, item_final = fwd(
        user_emb, item_emb, r_bf, rt_bf,
        creator_features=creator_features, creator_layers=creator_layers,
        item_features=item_features, item_layers=item_layers,
    )
    jax.block_until_ready((user_final, item_final))

    assert user_final.shape == (n_users, latent_dim)
    assert item_final.shape == (m_items, latent_dim)

    # Loose sanity check vs a pure-JAX f32 reference (bf16 adjacency/propagation
    # operands introduce ~1% error, far below this tolerance).
    ref_u, ref_i = reference_forward(
        user_emb, item_emb, r_norm, n_layers,
        creator_features, creator_layers, item_features, item_layers)
    err_u = float(jnp.max(jnp.abs(user_final - ref_u)))
    err_i = float(jnp.max(jnp.abs(item_final - ref_i)))
    assert err_u < 0.1 and err_i < 0.1, (err_u, err_i)

    print("KERNEL_OK")
</pallas_src>

<mosaic_0001>
module attributes {stable_mosaic.version = 11 : i64} {
  func.func @_prop_kernel(%arg0: i32, %arg1: i32, %arg2: memref<128x128xbf16, #tpu.memory_space<vmem>>, %arg3: memref<128x128xbf16, #tpu.memory_space<vmem>>, %arg4: memref<128x128xf32, #tpu.memory_space<vmem>>, %arg5: memref<128x128xbf16, #tpu.memory_space<vmem>>, %arg6: memref<128x128xf32, #tpu.memory_space<vmem>>, %arg7: memref<128x128xf32, #tpu.memory_space<vmem>>) attributes {dimension_semantics = [#tpu.dimension_semantics<parallel>, #tpu.dimension_semantics<arbitrary>], iteration_bounds = array<i64: 1, 1>, scalar_prefetch = 0 : i64, scratch_operands = 1 : i64, tpu.core_type = #tpu.core_type<tc>, window_params = [{transform_indices = @transform_0, window_bounds = array<i64: 128, 128>}, {transform_indices = @transform_1, window_bounds = array<i64: 128, 128>}, {transform_indices = @transform_2, window_bounds = array<i64: 128, 128>}, {transform_indices = @transform_3, window_bounds = array<i64: 128, 128>}, {transform_indices = @transform_4, window_bounds = array<i64: 128, 128>}]} {
    %c0_i32 = arith.constant 0 : i32
    %0 = arith.cmpi eq, %arg1, %c0_i32 : i32
    %1 = arith.extui %0 : i1 to i32
    %c0_i32_0 = arith.constant 0 : i32
    %2 = arith.cmpi ne, %1, %c0_i32_0 : i32
    scf.if %2 {
      %cst_10 = arith.constant 0.000000e+00 : f32
      %12 = vector.broadcast %cst_10 : f32 to vector<128x128xf32>
      %c0_11 = arith.constant 0 : index
      %c0_12 = arith.constant 0 : index
      %13 = vector.load %arg7[%c0_11, %c0_12] : memref<128x128xf32, #tpu.memory_space<vmem>>, vector<128x128xf32>
      tpu.vector_store %arg7[%c0_11, %c0_12], %12 {strides = array<i32>} : memref<128x128xf32, #tpu.memory_space<vmem>>, vector<128x128xf32>,
    } else {
    }
    %c0 = arith.constant 0 : index
    %c0_1 = arith.constant 0 : index
    %3 = vector.load %arg7[%c0, %c0_1] : memref<128x128xf32, #tpu.memory_space<vmem>>, vector<128x128xf32>
    %c0_2 = arith.constant 0 : index
    %c0_3 = arith.constant 0 : index
    %4 = vector.load %arg2[%c0_2, %c0_3] : memref<128x128xbf16, #tpu.memory_space<vmem>>, vector<128x128xbf16>
    %c0_4 = arith.constant 0 : index
    %c0_5 = arith.constant 0 : index
    %5 = vector.load %arg3[%c0_4, %c0_5] : memref<128x128xbf16, #tpu.memory_space<vmem>>, vector<128x128xbf16>
    %cst = arith.constant dense<0.000000e+00> : vector<128x128xf32>
    %6 = tpu.matmul %4, %5, %cst {dimension_numbers = #tpu.dot_dimension_numbers<[1], [0], [0], [1], [0, 0, 1, 1], [], []>} : vector<128x128xbf16>, vector<128x128xbf16>, vector<128x128xf32> -> vector<128x128xf32>
    %7 = arith.addf %3, %6 : vector<128x128xf32>
    %c0_6 = arith.constant 0 : index
    %c0_7 = arith.constant 0 : index
    %8 = vector.load %arg7[%c0_6, %c0_7] : memref<128x128xf32, #tpu.memory_space<vmem>>, vector<128x128xf32>
    tpu.vector_store %arg7[%c0_6, %c0_7], %7 {strides = array<i32>} : memref<128x128xf32, #tpu.memory_space<vmem>>, vector<128x128xf32>,
    %c0_i32_8 = arith.constant 0 : i32
    %9 = arith.cmpi eq, %arg1, %c0_i32_8 : i32
    %10 = arith.extui %9 : i1 to i32
    %c0_i32_9 = arith.constant 0 : i32
    %11 = arith.cmpi ne, %10, %c0_i32_9 : i32
    scf.if %11 {
      %c0_10 = arith.constant 0 : index
      %c0_11 = arith.constant 0 : index
      %12 = vector.load %arg7[%c0_10, %c0_11] : memref<128x128xf32, #tpu.memory_space<vmem>>, vector<128x128xf32>
      %13 = arith.truncf %12 : vector<128x128xf32> to vector<128x128xbf16>
      %c0_12 = arith.constant 0 : index
      %c0_13 = arith.constant 0 : index
      %14 = vector.load %arg5[%c0_12, %c0_13] : memref<128x128xbf16, #tpu.memory_space<vmem>>, vector<128x128xbf16>
      tpu.vector_store %arg5[%c0_12, %c0_13], %13 {strides = array<i32>} : memref<128x128xbf16, #tpu.memory_space<vmem>>, vector<128x128xbf16>,
      %c0_14 = arith.constant 0 : index
      %c0_15 = arith.constant 0 : index
      %15 = vector.load %arg4[%c0_14, %c0_15] : memref<128x128xf32, #tpu.memory_space<vmem>>, vector<128x128xf32>
      %16 = arith.addf %15, %12 : vector<128x128xf32>
      %c0_16 = arith.constant 0 : index
      %c0_17 = arith.constant 0 : index
      %17 = vector.load %arg6[%c0_16, %c0_17] : memref<128x128xf32, #tpu.memory_space<vmem>>, vector<128x128xf32>
      tpu.vector_store %arg6[%c0_16, %c0_17], %16 {strides = array<i32>} : memref<128x128xf32, #tpu.memory_space<vmem>>, vector<128x128xf32>,
    } else {
    }
    return
  }
  func.func @transform_0(%arg0: i32, %arg1: i32) -> (i32, i32) {
    %c0_i32 = arith.constant 0 : i32
    return %arg0, %arg1 : i32, i32
  }
  func.func @transform_1(%arg0: i32, %arg1: i32) -> (i32, i32) {
    %c0_i32 = arith.constant 0 : i32
    %c0_i32_0 = arith.constant 0 : i32
    return %arg1, %c0_i32 : i32, i32
  }
  func.func @transform_2(%arg0: i32, %arg1: i32) -> (i32, i32) {
    %c0_i32 = arith.constant 0 : i32
    %c0_i32_0 = arith.constant 0 : i32
    return %arg0, %c0_i32 : i32, i32
  }
  func.func @transform_3(%arg0: i32, %arg1: i32) -> (i32, i32) {
    %c0_i32 = arith.constant 0 : i32
    %c0_i32_0 = arith.constant 0 : i32
    return %arg0, %c0_i32 : i32, i32
  }
  func.func @transform_4(%arg0: i32, %arg1: i32) -> (i32, i32) {
    %c0_i32 = arith.constant 0 : i32
    %c0_i32_0 = arith.constant 0 : i32
    return %arg0, %c0_i32 : i32, i32
  }
}

module attributes {stable_mosaic.version = 11 : i64} {
  func.func @_feature_fuse_kernel(%arg0: i32, %arg1: memref<128x128xf32, #tpu.memory_space<vmem>>, %arg2: memref<128x128xbf16, #tpu.memory_space<vmem>>, %arg3: memref<128x128xbf16, #tpu.memory_space<vmem>>, %arg4: memref<1x128xf32, #tpu.memory_space<vmem>>, %arg5: memref<128x128xf32, #tpu.memory_space<vmem>>, %arg6: memref<128x128xbf16, #tpu.memory_space<vmem>>) attributes {dimension_semantics = [#tpu.dimension_semantics<parallel>], iteration_bounds = array<i64: 1>, scalar_prefetch = 0 : i64, scratch_operands = 0 : i64, tpu.core_type = #tpu.core_type<tc>, window_params = [{transform_indices = @transform_0, window_bounds = array<i64: 128, 128>}, {transform_indices = @transform_1, window_bounds = array<i64: 128, 128>}, {pipeline_mode = #tpu.pipeline_mode<synchronous>, transform_indices = @transform_2, window_bounds = array<i64: 128, 128>}, {pipeline_mode = #tpu.pipeline_mode<synchronous>, transform_indices = @transform_3, window_bounds = array<i64: 1, 128>}, {transform_indices = @transform_4, window_bounds = array<i64: 128, 128>}, {transform_indices = @transform_5, window_bounds = array<i64: 128, 128>}]} {
    %c0 = arith.constant 0 : index
    %c0_0 = arith.constant 0 : index
    %0 = vector.load %arg1[%c0, %c0_0] : memref<128x128xf32, #tpu.memory_space<vmem>>, vector<128x128xf32>
    %c0_1 = arith.constant 0 : index
    %c0_2 = arith.constant 0 : index
    %1 = vector.load %arg2[%c0_1, %c0_2] : memref<128x128xbf16, #tpu.memory_space<vmem>>, vector<128x128xbf16>
    %c0_3 = arith.constant 0 : index
    %c0_4 = arith.constant 0 : index
    %2 = vector.load %arg3[%c0_3, %c0_4] : memref<128x128xbf16, #tpu.memory_space<vmem>>, vector<128x128xbf16>
    %cst = arith.constant dense<0.000000e+00> : vector<128x128xf32>
    %3 = tpu.matmul %1, %2, %cst {dimension_numbers = #tpu.dot_dimension_numbers<[1], [0], [0], [1], [0, 0, 1, 1], [], []>} : vector<128x128xbf16>, vector<128x128xbf16>, vector<128x128xf32> -> vector<128x128xf32>
    %4 = arith.addf %0, %3 : vector<128x128xf32>
    %c0_5 = arith.constant 0 : index
    %c0_6 = arith.constant 0 : index
    %5 = vector.load %arg4[%c0_5, %c0_6] : memref<1x128xf32, #tpu.memory_space<vmem>>, vector<1x128xf32>
    %6 = vector.broadcast %5 : vector<1x128xf32> to vector<128x128xf32>
    %7 = arith.addf %4, %6 : vector<128x128xf32>
    %c0_7 = arith.constant 0 : index
    %c0_8 = arith.constant 0 : index
    %8 = vector.load %arg5[%c0_7, %c0_8] : memref<128x128xf32, #tpu.memory_space<vmem>>, vector<128x128xf32>
    tpu.vector_store %arg5[%c0_7, %c0_8], %7 {strides = array<i32>} : memref<128x128xf32, #tpu.memory_space<vmem>>, vector<128x128xf32>,
    %9 = arith.truncf %7 : vector<128x128xf32> to vector<128x128xbf16>
    %c0_9 = arith.constant 0 : index
    %c0_10 = arith.constant 0 : index
    %10 = vector.load %arg6[%c0_9, %c0_10] : memref<128x128xbf16, #tpu.memory_space<vmem>>, vector<128x128xbf16>
    tpu.vector_store %arg6[%c0_9, %c0_10], %9 {strides = array<i32>} : memref<128x128xbf16, #tpu.memory_space<vmem>>, vector<128x128xbf16>,
    return
  }
  func.func @transform_0(%arg0: i32) -> (i32, i32) {
    %c0_i32 = arith.constant 0 : i32
    %c0_i32_0 = arith.constant 0 : i32
    return %arg0, %c0_i32 : i32, i32
  }
  func.func @transform_1(%arg0: i32) -> (i32, i32) {
    %c0_i32 = arith.constant 0 : i32
    %c0_i32_0 = arith.constant 0 : i32
    return %arg0, %c0_i32 : i32, i32
  }
  func.func @transform_2(%arg0: i32) -> (i32, i32) {
    %c0_i32 = arith.constant 0 : i32
    %c0_i32_0 = arith.constant 0 : i32
    %c0_i32_1 = arith.constant 0 : i32
    return %c0_i32, %c0_i32_0 : i32, i32
  }
  func.func @transform_3(%arg0: i32) -> (i32, i32) {
    %c0_i32 = arith.constant 0 : i32
    %c0_i32_0 = arith.constant 0 : i32
    %c0_i32_1 = arith.constant 0 : i32
    return %c0_i32, %c0_i32_0 : i32, i32
  }
  func.func @transform_4(%arg0: i32) -> (i32, i32) {
    %c0_i32 = arith.constant 0 : i32
    %c0_i32_0 = arith.constant 0 : i32
    return %arg0, %c0_i32 : i32, i32
  }
  func.func @transform_5(%arg0: i32) -> (i32, i32) {
    %c0_i32 = arith.constant 0 : i32
    %c0_i32_0 = arith.constant 0 : i32
    return %arg0, %c0_i32 : i32, i32
  }
}

module attributes {stable_mosaic.version = 11 : i64} {
  func.func @_prop_kernel(%arg0: i32, %arg1: i32, %arg2: memref<128x128xbf16, #tpu.memory_space<vmem>>, %arg3: memref<128x128xbf16, #tpu.memory_space<vmem>>, %arg4: memref<128x128xf32, #tpu.memory_space<vmem>>, %arg5: memref<128x128xf32, #tpu.memory_space<vmem>>, %arg6: memref<128x128xf32, #tpu.memory_space<vmem>>) attributes {dimension_semantics = [#tpu.dimension_semantics<parallel>, #tpu.dimension_semantics<arbitrary>], iteration_bounds = array<i64: 1, 1>, scalar_prefetch = 0 : i64, scratch_operands = 1 : i64, tpu.core_type = #tpu.core_type<tc>, window_params = [{transform_indices = @transform_0, window_bounds = array<i64: 128, 128>}, {transform_indices = @transform_1, window_bounds = array<i64: 128, 128>}, {transform_indices = @transform_2, window_bounds = array<i64: 128, 128>}, {transform_indices = @transform_3, window_bounds = array<i64: 128, 128>}]} {
    %c0_i32 = arith.constant 0 : i32
    %0 = arith.cmpi eq, %arg1, %c0_i32 : i32
    %1 = arith.extui %0 : i1 to i32
    %c0_i32_0 = arith.constant 0 : i32
    %2 = arith.cmpi ne, %1, %c0_i32_0 : i32
    scf.if %2 {
      %cst_10 = arith.constant 0.000000e+00 : f32
      %12 = vector.broadcast %cst_10 : f32 to vector<128x128xf32>
      %c0_11 = arith.constant 0 : index
      %c0_12 = arith.constant 0 : index
      %13 = vector.load %arg6[%c0_11, %c0_12] : memref<128x128xf32, #tpu.memory_space<vmem>>, vector<128x128xf32>
      tpu.vector_store %arg6[%c0_11, %c0_12], %12 {strides = array<i32>} : memref<128x128xf32, #tpu.memory_space<vmem>>, vector<128x128xf32>,
    } else {
    }
    %c0 = arith.constant 0 : index
    %c0_1 = arith.constant 0 : index
    %3 = vector.load %arg6[%c0, %c0_1] : memref<128x128xf32, #tpu.memory_space<vmem>>, vector<128x128xf32>
    %c0_2 = arith.constant 0 : index
    %c0_3 = arith.constant 0 : index
    %4 = vector.load %arg2[%c0_2, %c0_3] : memref<128x128xbf16, #tpu.memory_space<vmem>>, vector<128x128xbf16>
    %c0_4 = arith.constant 0 : index
    %c0_5 = arith.constant 0 : index
    %5 = vector.load %arg3[%c0_4, %c0_5] : memref<128x128xbf16, #tpu.memory_space<vmem>>, vector<128x128xbf16>
    %cst = arith.constant dense<0.000000e+00> : vector<128x128xf32>
    %6 = tpu.matmul %4, %5, %cst {dimension_numbers = #tpu.dot_dimension_numbers<[1], [0], [0], [1], [0, 0, 1, 1], [], []>} : vector<128x128xbf16>, vector<128x128xbf16>, vector<128x128xf32> -> vector<128x128xf32>
    %7 = arith.addf %3, %6 : vector<128x128xf32>
    %c0_6 = arith.constant 0 : index
    %c0_7 = arith.constant 0 : index
    %8 = vector.load %arg6[%c0_6, %c0_7] : memref<128x128xf32, #tpu.memory_space<vmem>>, vector<128x128xf32>
    tpu.vector_store %arg6[%c0_6, %c0_7], %7 {strides = array<i32>} : memref<128x128xf32, #tpu.memory_space<vmem>>, vector<128x128xf32>,
    %c0_i32_8 = arith.constant 0 : i32
    %9 = arith.cmpi eq, %arg1, %c0_i32_8 : i32
    %10 = arith.extui %9 : i1 to i32
    %c0_i32_9 = arith.constant 0 : i32
    %11 = arith.cmpi ne, %10, %c0_i32_9 : i32
    scf.if %11 {
      %c0_10 = arith.constant 0 : index
      %c0_11 = arith.constant 0 : index
      %12 = vector.load %arg6[%c0_10, %c0_11] : memref<128x128xf32, #tpu.memory_space<vmem>>, vector<128x128xf32>
      %c0_12 = arith.constant 0 : index
      %c0_13 = arith.constant 0 : index
      %13 = vector.load %arg4[%c0_12, %c0_13] : memref<128x128xf32, #tpu.memory_space<vmem>>, vector<128x128xf32>
      %14 = arith.addf %13, %12 : vector<128x128xf32>
      %cst_14 = arith.constant 2.500000e-01 : f32
      %15 = vector.broadcast %cst_14 : f32 to vector<128x128xf32>
      %16 = arith.mulf %14, %15 : vector<128x128xf32>
      %c0_15 = arith.constant 0 : index
      %c0_16 = arith.constant 0 : index
      %17 = vector.load %arg5[%c0_15, %c0_16] : memref<128x128xf32, #tpu.memory_space<vmem>>, vector<128x128xf32>
      tpu.vector_store %arg5[%c0_15, %c0_16], %16 {strides = array<i32>} : memref<128x128xf32, #tpu.memory_space<vmem>>, vector<128x128xf32>,
    } else {
    }
    return
  }
  func.func @transform_0(%arg0: i32, %arg1: i32) -> (i32, i32) {
    %c0_i32 = arith.constant 0 : i32
    return %arg0, %arg1 : i32, i32
  }
  func.func @transform_1(%arg0: i32, %arg1: i32) -> (i32, i32) {
    %c0_i32 = arith.constant 0 : i32
    %c0_i32_0 = arith.constant 0 : i32
    return %arg1, %c0_i32 : i32, i32
  }
  func.func @transform_2(%arg0: i32, %arg1: i32) -> (i32, i32) {
    %c0_i32 = arith.constant 0 : i32
    %c0_i32_0 = arith.constant 0 : i32
    return %arg0, %c0_i32 : i32, i32
  }
  func.func @transform_3(%arg0: i32, %arg1: i32) -> (i32, i32) {
    %c0_i32 = arith.constant 0 : i32
    %c0_i32_0 = arith.constant 0 : i32
    return %arg0, %c0_i32 : i32, i32
  }
}

</mosaic_0001>

<llo_original>
// kernel: lightgcn_forward.10
$region0: #{lightgcn_forward.10}
  #allocation0 [shape = 'u32[]', space=smem, size = 0x4, offset = 0x4, fixed_abs, tag = 'smem constant byte address 0x4 - core index']
  #allocation1 [shape = 'u32[144,128]{1,0:T(1,128)}', space=vmem, size = 0x12000, scoped, tag = 'internal scratch']
  #allocation2 [shape = 'f32[128,128]{1,0:T(8,128)}', space=vmem, size = 0x10000, scoped, tag = 'scratch operand']
  %s0 = inlined_call_operand.vmem [shape: bf16[128,128], index: 0, kind: input, shape index: {}]
  %s1 = inlined_call_operand.vmem [shape: bf16[128,128], index: 1, kind: input, shape index: {}]
  %s2 = inlined_call_operand.vmem [shape: f32[128,128], index: 2, kind: input, shape index: {}, may-alias: {2,4}]
  %s3 = inlined_call_operand.vmem [shape: bf16[128,128], index: 3, kind: output, shape index: {0}]
  %s4 = inlined_call_operand.vmem [shape: f32[128,128], index: 4, kind: output, shape index: {1}, may-alias: {2,4}]
  %5 = xla_tuple %s3, %s4
  %s6 = sld [smem:[#allocation0]]
  $region38: #{lightgcn_forward.10} parent=0
    _
  %s8 = ssub.s32 1, %s6
  %s9 = scalar_select 0, %s8, %s6
  // Predicated region
  $region2: #{lightgcn_forward.10} parent=0 // pred_check
    _
  $region3: #{lightgcn_forward.10} parent=0 // pred_check_branch
    %11 = sbr.rel (0) target = $region5
  $region4: #{lightgcn_forward.10} parent=0 // pred_region
    _
  $region5: #{lightgcn_forward.10} parent=0 // pred_fallthru
    _
  // Predicated region
  $region6: #{lightgcn_forward.10} parent=0 // pred_check
    _
  $region7: #{lightgcn_forward.10} parent=0 // pred_check_branch
    %13 = sbr.rel (0) target = $region9
  $region8: #{lightgcn_forward.10} parent=0 // pred_region
    _
  $region9: #{lightgcn_forward.10} parent=0 // pred_fallthru
    _
  // Predicated region
  $region10: #{lightgcn_forward.10} parent=0 // pred_check
    _
  $region11: #{lightgcn_forward.10} parent=0 // pred_check_branch
    %15 = sbr.rel (0) target = $region13
  $region12: #{lightgcn_forward.10} parent=0 // pred_region
    _
  $region13: #{lightgcn_forward.10} parent=0 // pred_fallthru
    _
  %p17 = scmp.eq.s32.totalorder 0, 0
  // Predicated region
  $region14: #{lightgcn_forward.10} parent=0 // pred_check
    %p18 = pneg %p17
  $region15: #{lightgcn_forward.10} parent=0 // pred_check_branch
    %20 = sbr.rel (%p18) target = $region17
  $region16: #{lightgcn_forward.10} parent=0 // pred_region
    %21 = vst [vmem:[#allocation2] sm:$0xff] 0.0
    %22 = vst [vmem:[#allocation2 + $0x8] sm:$0xff] 0.0
    %23 = vst [vmem:[#allocation2 + $0x10] sm:$0xff] 0.0
    %24 = vst [vmem:[#allocation2 + $0x18] sm:$0xff] 0.0
    %25 = vst [vmem:[#allocation2 + $0x20] sm:$0xff] 0.0
    %26 = vst [vmem:[#allocation2 + $0x28] sm:$0xff] 0.0
    %27 = vst [vmem:[#allocation2 + $0x30] sm:$0xff] 0.0
    %28 = vst [vmem:[#allocation2 + $0x38] sm:$0xff] 0.0
    %29 = vst [vmem:[#allocation2 + $0x40] sm:$0xff] 0.0
    %30 = vst [vmem:[#allocation2 + $0x48] sm:$0xff] 0.0
    %31 = vst [vmem:[#allocation2 + $0x50] sm:$0xff] 0.0
    %32 = vst [vmem:[#allocation2 + $0x58] sm:$0xff] 0.0
    %33 = vst [vmem:[#allocation2 + $0x60] sm:$0xff] 0.0
    %34 = vst [vmem:[#allocation2 + $0x68] sm:$0xff] 0.0
    %35 = vst [vmem:[#allocation2 + $0x70] sm:$0xff] 0.0
    %36 = vst [vmem:[#allocation2 + $0x78] sm:$0xff] 0.0
  $region17: #{lightgcn_forward.10} parent=0 // pred_fallthru
    _
  %v37 = vld [vmem:[#allocation2] sm:$0xff]
  %v38 = vld [vmem:[#allocation2 + $0x8] sm:$0xff]
  %v39 = vld [vmem:[#allocation2 + $0x10] sm:$0xff]
  %v40 = vld [vmem:[#allocation2 + $0x18] sm:$0xff]
  %v41 = vld [vmem:[#allocation2 + $0x20] sm:$0xff]
  %v42 = vld [vmem:[#allocation2 + $0x28] sm:$0xff]
  %v43 = vld [vmem:[#allocation2 + $0x30] sm:$0xff]
  %v44 = vld [vmem:[#allocation2 + $0x38] sm:$0xff]
  %v45 = vld [vmem:[#allocation2 + $0x40] sm:$0xff]
  %v46 = vld [vmem:[#allocation2 + $0x48] sm:$0xff]
  %v47 = vld [vmem:[#allocation2 + $0x50] sm:$0xff]
  %v48 = vld [vmem:[#allocation2 + $0x58] sm:$0xff]
  %v49 = vld [vmem:[#allocation2 + $0x60] sm:$0xff]
  %v50 = vld [vmem:[#allocation2 + $0x68] sm:$0xff]
  %v51 = vld [vmem:[#allocation2 + $0x70] sm:$0xff]
  %v52 = vld [vmem:[#allocation2 + $0x78] sm:$0xff]
  %v53 = vld [vmem:[%s0] sm:$0xf]
  %v54 = vld [vmem:[%s0 + $0x4] sm:$0xf]
  %v55 = vld [vmem:[%s0 + $0x8] sm:$0xf]
  %v56 = vld [vmem:[%s0 + $0xc] sm:$0xf]
  %v57 = vld [vmem:[%s0 + $0x10] sm:$0xf]
  %v58 = vld [vmem:[%s0 + $0x14] sm:$0xf]
  %v59 = vld [vmem:[%s0 + $0x18] sm:$0xf]
  %v60 = vld [vmem:[%s0 + $0x1c] sm:$0xf]
  %v61 = vld [vmem:[%s0 + $0x20] sm:$0xf]
  %v62 = vld [vmem:[%s0 + $0x24] sm:$0xf]
  %v63 = vld [vmem:[%s0 + $0x28] sm:$0xf]
  %v64 = vld [vmem:[%s0 + $0x2c] sm:$0xf]
  %v65 = vld [vmem:[%s0 + $0x30] sm:$0xf]
  %v66 = vld [vmem:[%s0 + $0x34] sm:$0xf]
  %v67 = vld [vmem:[%s0 + $0x38] sm:$0xf]
  %v68 = vld [vmem:[%s0 + $0x3c] sm:$0xf]
  %v69 = vld [vmem:[%s1] sm:$0xf]
  %v70 = vld [vmem:[%s1 + $0x4] sm:$0xf]
  %v71 = vld [vmem:[%s1 + $0x8] sm:$0xf]
  %v72 = vld [vmem:[%s1 + $0xc] sm:$0xf]
  %v73 = vld [vmem:[%s1 + $0x10] sm:$0xf]
  %v74 = vld [vmem:[%s1 + $0x14] sm:$0xf]
  %v75 = vld [vmem:[%s1 + $0x18] sm:$0xf]
  %v76 = vld [vmem:[%s1 + $0x1c] sm:$0xf]
  %v77 = vld [vmem:[%s1 + $0x20] sm:$0xf]
  %v78 = vld [vmem:[%s1 + $0x24] sm:$0xf]
  %v79 = vld [vmem:[%s1 + $0x28] sm:$0xf]
  %v80 = vld [vmem:[%s1 + $0x2c] sm:$0xf]
  %v81 = vld [vmem:[%s1 + $0x30] sm:$0xf]
  %v82 = vld [vmem:[%s1 + $0x34] sm:$0xf]
  %v83 = vld [vmem:[%s1 + $0x38] sm:$0xf]
  %v84 = vld [vmem:[%s1 + $0x3c] sm:$0xf]
  %v101 = vunpack.c.l.b16 %v53
  %v102 = vunpack.c.l.b16 %v54
  %v103 = vunpack.c.l.b16 %v55
  %v104 = vunpack.c.l.b16 %v56
  %v105 = vunpack.c.l.b16 %v57
  %v106 = vunpack.c.l.b16 %v58
  %v107 = vunpack.c.l.b16 %v59
  %v108 = vunpack.c.l.b16 %v60
  %v109 = vunpack.c.l.b16 %v61
  %v110 = vunpack.c.l.b16 %v62
  %v111 = vunpack.c.l.b16 %v63
  %v112 = vunpack.c.l.b16 %v64
  %v113 = vunpack.c.l.b16 %v65
  %v114 = vunpack.c.l.b16 %v66
  %v115 = vunpack.c.l.b16 %v67
  %v116 = vunpack.c.l.b16 %v68
  %v117 = vpack.c.b16 %v102, %v101
  %v118 = vpack.c.b16 %v104, %v103
  %v119 = vpack.c.b16 %v106, %v105
  %v120 = vpack.c.b16 %v108, %v107
  %v121 = vpack.c.b16 %v110, %v109
  %v122 = vpack.c.b16 %v112, %v111
  %v123 = vpack.c.b16 %v114, %v113
  %v124 = vpack.c.b16 %v116, %v115
  %v149 = vunpack.c.l.b16 %v69
  %v150 = vunpack.c.l.b16 %v70
  %v151 = vunpack.c.l.b16 %v71
  %v152 = vunpack.c.l.b16 %v72
  %v153 = vunpack.c.l.b16 %v73
  %v154 = vunpack.c.l.b16 %v74
  %v155 = vunpack.c.l.b16 %v75
  %v156 = vunpack.c.l.b16 %v76
  %v157 = vunpack.c.l.b16 %v77
  %v158 = vunpack.c.l.b16 %v78
  %v159 = vunpack.c.l.b16 %v79
  %v160 = vunpack.c.l.b16 %v80
  %v161 = vunpack.c.l.b16 %v81
  %v162 = vunpack.c.l.b16 %v82
  %v163 = vunpack.c.l.b16 %v83
  %v164 = vunpack.c.l.b16 %v84
  %v165 = vpack.c.b16 %v150, %v149
  %v166 = vpack.c.b16 %v152, %v151
  %v167 = vpack.c.b16 %v154, %v153
  %v168 = vpack.c.b16 %v156, %v155
  %v169 = vpack.c.b16 %v158, %v157
  %v170 = vpack.c.b16 %v160, %v159
  %v171 = vpack.c.b16 %v162, %v161
  %v172 = vpack.c.b16 %v164, %v163
  %181 = vmatprep.subr.bf16.mxu0 0
  %182 = vmatpush1.bf16.msra.mxu0 %v172
  %183 = vmatprep.subr.bf16.mxu0 0
  %184 = vmatpush1.bf16.msra.mxu0 %v171
  %185 = vmatprep.subr.bf16.mxu0 0
  %186 = vmatpush1.bf16.msra.mxu0 %v170
  %187 = vmatprep.subr.bf16.mxu0 0
  %188 = vmatpush1.bf16.msra.mxu0 %v169
  %189 = vmatprep.subr.bf16.mxu0 0
  %190 = vmatpush1.bf16.msra.mxu0 %v168
  %191 = vmatprep.subr.bf16.mxu0 0
  %192 = vmatpush1.bf16.msra.mxu0 %v167
  %193 = vmatprep.subr.bf16.mxu0 0
  %194 = vmatpush1.bf16.msra.mxu0 %v166
  %195 = vmatprep.subr.bf16.mxu0 0
  %196 = vmatpush1.bf16.msra.mxu0 %v165
  %197 = vmatprep.subr.bf16.mxu0 0
  %198 = vmatpush2.bf16.msra.mxu0 0
  %199 = vmatprep.subr.bf16.mxu0 0
  %200 = vmatpush2.bf16.msra.mxu0 0
  %201 = vmatprep.subr.bf16.mxu0 0
  %202 = vmatpush2.bf16.msra.mxu0 0
  %203 = vmatprep.subr.bf16.mxu0 0
  %204 = vmatpush2.bf16.msra.mxu0 0
  %205 = vmatprep.subr.bf16.mxu0 0
  %206 = vmatpush2.bf16.msra.mxu0 0
  %207 = vmatprep.subr.bf16.mxu0 0
  %208 = vmatpush2.bf16.msra.mxu0 0
  %209 = vmatprep.subr.bf16.mxu0 0
  %210 = vmatpush2.bf16.msra.mxu0 0
  %211 = vmatprep.subr.bf16.mxu0 0
  %212 = vmatpush2.bf16.msra.mxu0 0
  %213 = vmatprep.mubr.bf16.mxu0 0
  %214 = vmatmul.mubr.bf16.gmra.mxu0 %v117
  %v215 = vpop.f32.mrf.mxu0
  %v216 = vadd.f32 0.0, %v215
  %v217 = vpop.f32.mrf.mxu0
  %v218 = vpop.f32.mrf.mxu0
  %v219 = vadd.f32 0.0, %v218
  %v220 = vpop.f32.mrf.mxu0
  %221 = vmatprep.mubr.bf16.mxu0 0
  %222 = vmatmul.mubr.bf16.gmra.mxu0 %v118
  %v223 = vpop.f32.mrf.mxu0
  %v224 = vadd.f32 0.0, %v223
  %v225 = vpop.f32.mrf.mxu0
  %v226 = vpop.f32.mrf.mxu0
  %v227 = vadd.f32 0.0, %v226
  %v228 = vpop.f32.mrf.mxu0
  %229 = vmatprep.mubr.bf16.mxu0 0
  %230 = vmatmul.mubr.bf16.gmra.mxu0 %v119
  %v231 = vpop.f32.mrf.mxu0
  %v232 = vadd.f32 0.0, %v231
  %v233 = vpop.f32.mrf.mxu0
  %v234 = vpop.f32.mrf.mxu0
  %v235 = vadd.f32 0.0, %v234
  %v236 = vpop.f32.mrf.mxu0
  %237 = vmatprep.mubr.bf16.mxu0 0
  %238 = vmatmul.mubr.bf16.gmra.mxu0 %v120
  %v239 = vpop.f32.mrf.mxu0
  %v240 = vadd.f32 0.0, %v239
  %v241 = vpop.f32.mrf.mxu0
  %v242 = vpop.f32.mrf.mxu0
  %v243 = vadd.f32 0.0, %v242
  %v244 = vpop.f32.mrf.mxu0
  %245 = vmatprep.mubr.bf16.mxu0 0
  %246 = vmatmul.mubr.bf16.gmra.mxu0 %v121
  %v247 = vpop.f32.mrf.mxu0
  %v248 = vadd.f32 0.0, %v247
  %v249 = vpop.f32.mrf.mxu0
  %v250 = vpop.f32.mrf.mxu0
  %v251 = vadd.f32 0.0, %v250
  %v252 = vpop.f32.mrf.mxu0
  %253 = vmatprep.mubr.bf16.mxu0 0
  %254 = vmatmul.mubr.bf16.gmra.mxu0 %v122
  %v255 = vpop.f32.mrf.mxu0
  %v256 = vadd.f32 0.0, %v255
  %v257 = vpop.f32.mrf.mxu0
  %v258 = vpop.f32.mrf.mxu0
  %v259 = vadd.f32 0.0, %v258
  %v260 = vpop.f32.mrf.mxu0
  %261 = vmatprep.mubr.bf16.mxu0 0
  %262 = vmatmul.mubr.bf16.gmra.mxu0 %v123
  %v263 = vpop.f32.mrf.mxu0
  %v264 = vadd.f32 0.0, %v263
  %v265 = vpop.f32.mrf.mxu0
  %v266 = vpop.f32.mrf.mxu0
  %v267 = vadd.f32 0.0, %v266
  %v268 = vpop.f32.mrf.mxu0
  %269 = vmatprep.mubr.bf16.mxu0 0
  %270 = vmatmul.mubr.bf16.gmra.mxu0 %v124
  %v271 = vpop.f32.mrf.mxu0
  %v272 = vadd.f32 0.0, %v271
  %v273 = vpop.f32.mrf.mxu0
  %v274 = vpop.f32.mrf.mxu0
  %v275 = vadd.f32 0.0, %v274
  %v276 = vpop.f32.mrf.mxu0
  %277 = vdwg.mxu0
  %v278 = vadd.f32 %v37, %v216
  %v279 = vadd.f32 %v38, %v219
  %v280 = vadd.f32 %v39, %v224
  %v281 = vadd.f32 %v40, %v227
  %v282 = vadd.f32 %v41, %v232
  %v283 = vadd.f32 %v42, %v235
  %v284 = vadd.f32 %v43, %v240
  %v285 = vadd.f32 %v44, %v243
  %v286 = vadd.f32 %v45, %v248
  %v287 = vadd.f32 %v46, %v251
  %v288 = vadd.f32 %v47, %v256
  %v289 = vadd.f32 %v48, %v259
  %v290 = vadd.f32 %v49, %v264
  %v291 = vadd.f32 %v50, %v267
  %v292 = vadd.f32 %v51, %v272
  %v293 = vadd.f32 %v52, %v275
  %294 = vst [vmem:[#allocation2] sm:$0xff] %v278
  %295 = vst [vmem:[#allocation2 + $0x8] sm:$0xff] %v279
  %296 = vst [vmem:[#allocation2 + $0x10] sm:$0xff] %v280
  %297 = vst [vmem:[#allocation2 + $0x18] sm:$0xff] %v281
  %298 = vst [vmem:[#allocation2 + $0x20] sm:$0xff] %v282
  %299 = vst [vmem:[#allocation2 + $0x28] sm:$0xff] %v283
  %300 = vst [vmem:[#allocation2 + $0x30] sm:$0xff] %v284
  %301 = vst [vmem:[#allocation2 + $0x38] sm:$0xff] %v285
  %302 = vst [vmem:[#allocation2 + $0x40] sm:$0xff] %v286
  %303 = vst [vmem:[#allocation2 + $0x48] sm:$0xff] %v287
  %304 = vst [vmem:[#allocation2 + $0x50] sm:$0xff] %v288
  %305 = vst [vmem:[#allocation2 + $0x58] sm:$0xff] %v289
  %306 = vst [vmem:[#allocation2 + $0x60] sm:$0xff] %v290
  %307 = vst [vmem:[#allocation2 + $0x68] sm:$0xff] %v291
  %308 = vst [vmem:[#allocation2 + $0x70] sm:$0xff] %v292
  %309 = vst [vmem:[#allocation2 + $0x78] sm:$0xff] %v293
  // Predicated region
  $region18: #{lightgcn_forward.10} parent=0 // pred_check
    %p310 = pneg %p17
  $region19: #{lightgcn_forward.10} parent=0 // pred_check_branch
    %312 = sbr.rel (%p310) target = $region21
  $region20: #{lightgcn_forward.10} parent=0 // pred_region
    %v313 = vld [vmem:[#allocation2] sm:$0xff]
    %v314 = vld [vmem:[#allocation2 + $0x8] sm:$0xff]
    %v315 = vld [vmem:[#allocation2 + $0x10] sm:$0xff]
    %v316 = vld [vmem:[#allocation2 + $0x18] sm:$0xff]
    %v317 = vld [vmem:[#allocation2 + $0x20] sm:$0xff]
    %v318 = vld [vmem:[#allocation2 + $0x28] sm:$0xff]
    %v319 = vld [vmem:[#allocation2 + $0x30] sm:$0xff]
    %v320 = vld [vmem:[#allocation2 + $0x38] sm:$0xff]
    %v321 = vld [vmem:[#allocation2 + $0x40] sm:$0xff]
    %v322 = vld [vmem:[#allocation2 + $0x48] sm:$0xff]
    %v323 = vld [vmem:[#allocation2 + $0x50] sm:$0xff]
    %v324 = vld [vmem:[#allocation2 + $0x58] sm:$0xff]
    %v325 = vld [vmem:[#allocation2 + $0x60] sm:$0xff]
    %v326 = vld [vmem:[#allocation2 + $0x68] sm:$0xff]
    %v327 = vld [vmem:[#allocation2 + $0x70] sm:$0xff]
    %v328 = vld [vmem:[#allocation2 + $0x78] sm:$0xff]
    %v329 = vpack.c.bf16 %v314, %v313
    %v330 = vpack.c.bf16 %v316, %v315
    %v331 = vpack.c.bf16 %v318, %v317
    %v332 = vpack.c.bf16 %v320, %v319
    %v333 = vpack.c.bf16 %v322, %v321
    %v334 = vpack.c.bf16 %v324, %v323
    %v335 = vpack.c.bf16 %v326, %v325
    %v336 = vpack.c.bf16 %v328, %v327
    %v345 = vunpack.c.l.b16 %v329
    %v346 = vunpack.c.h.b16 %v329
    %v347 = vunpack.c.l.b16 %v330
    %v348 = vunpack.c.h.b16 %v330
    %v349 = vunpack.c.l.b16 %v331
    %v350 = vunpack.c.h.b16 %v331
    %v351 = vunpack.c.l.b16 %v332
    %v352 = vunpack.c.h.b16 %v332
    %v353 = vunpack.c.l.b16 %v333
    %v354 = vunpack.c.h.b16 %v333
    %v355 = vunpack.c.l.b16 %v334
    %v356 = vunpack.c.h.b16 %v334
    %v357 = vunpack.c.l.b16 %v335
    %v358 = vunpack.c.h.b16 %v335
    %v359 = vunpack.c.l.b16 %v336
    %v360 = vunpack.c.h.b16 %v336
    %v361 = vpack.c.b16 %v345, %v345
    %v362 = vpack.c.b16 %v346, %v346
    %v363 = vpack.c.b16 %v347, %v347
    %v364 = vpack.c.b16 %v348, %v348
    %v365 = vpack.c.b16 %v349, %v349
    %v366 = vpack.c.b16 %v350, %v350
    %v367 = vpack.c.b16 %v351, %v351
    %v368 = vpack.c.b16 %v352, %v352
    %v369 = vpack.c.b16 %v353, %v353
    %v370 = vpack.c.b16 %v354, %v354
    %v371 = vpack.c.b16 %v355, %v355
    %v372 = vpack.c.b16 %v356, %v356
    %v373 = vpack.c.b16 %v357, %v357
    %v374 = vpack.c.b16 %v358, %v358
    %v375 = vpack.c.b16 %v359, %v359
    %v376 = vpack.c.b16 %v360, %v360
    %393 = vst [vmem:[%s3] sm:$0xf] %v361
    %394 = vst [vmem:[%s3 + $0x4] sm:$0xf] %v362
    %395 = vst [vmem:[%s3 + $0x8] sm:$0xf] %v363
    %396 = vst [vmem:[%s3 + $0xc] sm:$0xf] %v364
    %397 = vst [vmem:[%s3 + $0x10] sm:$0xf] %v365
    %398 = vst [vmem:[%s3 + $0x14] sm:$0xf] %v366
    %399 = vst [vmem:[%s3 + $0x18] sm:$0xf] %v367
    %400 = vst [vmem:[%s3 + $0x1c] sm:$0xf] %v368
    %401 = vst [vmem:[%s3 + $0x20] sm:$0xf] %v369
    %402 = vst [vmem:[%s3 + $0x24] sm:$0xf] %v370
    %403 = vst [vmem:[%s3 + $0x28] sm:$0xf] %v371
    %404 = vst [vmem:[%s3 + $0x2c] sm:$0xf] %v372
    %405 = vst [vmem:[%s3 + $0x30] sm:$0xf] %v373
    %406 = vst [vmem:[%s3 + $0x34] sm:$0xf] %v374
    %407 = vst [vmem:[%s3 + $0x38] sm:$0xf] %v375
    %408 = vst [vmem:[%s3 + $0x3c] sm:$0xf] %v376
    %v409 = vld [vmem:[%s2] sm:$0xff]
    %v410 = vld [vmem:[%s2 + $0x8] sm:$0xff]
    %v411 = vld [vmem:[%s2 + $0x10] sm:$0xff]
    %v412 = vld [vmem:[%s2 + $0x18] sm:$0xff]
    %v413 = vld [vmem:[%s2 + $0x20] sm:$0xff]
    %v414 = vld [vmem:[%s2 + $0x28] sm:$0xff]
    %v415 = vld [vmem:[%s2 + $0x30] sm:$0xff]
    %v416 = vld [vmem:[%s2 + $0x38] sm:$0xff]
    %v417 = vld [vmem:[%s2 + $0x40] sm:$0xff]
    %v418 = vld [vmem:[%s2 + $0x48] sm:$0xff]
    %v419 = vld [vmem:[%s2 + $0x50] sm:$0xff]
    %v420 = vld [vmem:[%s2 + $0x58] sm:$0xff]
    %v421 = vld [vmem:[%s2 + $0x60] sm:$0xff]
    %v422 = vld [vmem:[%s2 + $0x68] sm:$0xff]
    %v423 = vld [vmem:[%s2 + $0x70] sm:$0xff]
    %v424 = vld [vmem:[%s2 + $0x78] sm:$0xff]
    %v425 = vadd.f32 %v409, %v313
    %v426 = vadd.f32 %v410, %v314
    %v427 = vadd.f32 %v411, %v315
    %v428 = vadd.f32 %v412, %v316
    %v429 = vadd.f32 %v413, %v317
    %v430 = vadd.f32 %v414, %v318
    %v431 = vadd.f32 %v415, %v319
    %v432 = vadd.f32 %v416, %v320
    %v433 = vadd.f32 %v417, %v321
    %v434 = vadd.f32 %v418, %v322
    %v435 = vadd.f32 %v419, %v323
    %v436 = vadd.f32 %v420, %v324
    %v437 = vadd.f32 %v421, %v325
    %v438 = vadd.f32 %v422, %v326
    %v439 = vadd.f32 %v423, %v327
    %v440 = vadd.f32 %v424, %v328
    %441 = vst [vmem:[%s4] sm:$0xff] %v425
    %442 = vst [vmem:[%s4 + $0x8] sm:$0xff] %v426
    %443 = vst [vmem:[%s4 + $0x10] sm:$0xff] %v427
    %444 = vst [vmem:[%s4 + $0x18] sm:$0xff] %v428
    %445 = vst [vmem:[%s4 + $0x20] sm:$0xff] %v429
    %446 = vst [vmem:[%s4 + $0x28] sm:$0xff] %v430
    %447 = vst [vmem:[%s4 + $0x30] sm:$0xff] %v431
    %448 = vst [vmem:[%s4 + $0x38] sm:$0xff] %v432
    %449 = vst [vmem:[%s4 + $0x40] sm:$0xff] %v433
    %450 = vst [vmem:[%s4 + $0x48] sm:$0xff] %v434
    %451 = vst [vmem:[%s4 + $0x50] sm:$0xff] %v435
    %452 = vst [vmem:[%s4 + $0x58] sm:$0xff] %v436
    %453 = vst [vmem:[%s4 + $0x60] sm:$0xff] %v437
    %454 = vst [vmem:[%s4 + $0x68] sm:$0xff] %v438
    %455 = vst [vmem:[%s4 + $0x70] sm:$0xff] %v439
    %456 = vst [vmem:[%s4 + $0x78] sm:$0xff] %v440
  $region21: #{lightgcn_forward.10} parent=0 // pred_fallthru
    _
  // Predicated region
  $region22: #{lightgcn_forward.10} parent=0 // pred_check
    _
  $region23: #{lightgcn_forward.10} parent=0 // pred_check_branch
    %458 = sbr.rel (0) target = $region25
  $region24: #{lightgcn_forward.10} parent=0 // pred_region
    _
  $region25: #{lightgcn_forward.10} parent=0 // pred_fallthru
    _
  // Predicated region
  $region26: #{lightgcn_forward.10} parent=0 // pred_check
    _
  $region27: #{lightgcn_forward.10} parent=0 // pred_check_branch
    %460 = sbr.rel (0) target = $region29
  $region28: #{lightgcn_forward.10} parent=0 // pred_region
    _
  $region29: #{lightgcn_forward.10} parent=0 // pred_fallthru
    _
  // Predicated region
  $region30: #{lightgcn_forward.10} parent=0 // pred_check
    _
  $region31: #{lightgcn_forward.10} parent=0 // pred_check_branch
    %462 = sbr.rel (0) target = $region33
  $region32: #{lightgcn_forward.10} parent=0 // pred_region
    _
  $region33: #{lightgcn_forward.10} parent=0 // pred_fallthru
    _
  // Predicated region
  $region34: #{lightgcn_forward.10} parent=0 // pred_check
    _
  $region35: #{lightgcn_forward.10} parent=0 // pred_check_branch
    %464 = sbr.rel (0) target = $region37
  $region36: #{lightgcn_forward.10} parent=0 // pred_region
    _
  $region37: #{lightgcn_forward.10} parent=0 // pred_fallthru
    _

// kernel: lightgcn_forward.14
$region0: #{lightgcn_forward.14}
  #allocation0 [shape = 'u32[]', space=smem, size = 0x4, offset = 0x4, fixed_abs, tag = 'smem constant byte address 0x4 - core index']
  #allocation1 [shape = 'u32[144,128]{1,0:T(1,128)}', space=vmem, size = 0x12000, scoped, tag = 'internal scratch']
  #allocation2 [shape = 'f32[128,128]{1,0:T(8,128)}', space=vmem, size = 0x10000, scoped, tag = 'scratch operand']
  %s0 = inlined_call_operand.vmem [shape: bf16[128,128], index: 0, kind: input, shape index: {}]
  %s1 = inlined_call_operand.vmem [shape: bf16[128,128], index: 1, kind: input, shape index: {}]
  %s2 = inlined_call_operand.vmem [shape: f32[128,128], index: 2, kind: input, shape index: {}, may-alias: {2,3}]
  %s3 = inlined_call_operand.vmem [shape: f32[128,128], index: 3, kind: output, shape index: {}, may-alias: {2,3}]
  %s4 = sld [smem:[#allocation0]]
  $region30: #{lightgcn_forward.14} parent=0
    _
  %s6 = ssub.s32 1, %s4
  %s7 = scalar_select 0, %s6, %s4
  // Predicated region
  $region2: #{lightgcn_forward.14} parent=0 // pred_check
    _
  $region3: #{lightgcn_forward.14} parent=0 // pred_check_branch
    %9 = sbr.rel (0) target = $region5
  $region4: #{lightgcn_forward.14} parent=0 // pred_region
    _
  $region5: #{lightgcn_forward.14} parent=0 // pred_fallthru
    _
  // Predicated region
  $region6: #{lightgcn_forward.14} parent=0 // pred_check
    _
  $region7: #{lightgcn_forward.14} parent=0 // pred_check_branch
    %11 = sbr.rel (0) target = $region9
  $region8: #{lightgcn_forward.14} parent=0 // pred_region
    _
  $region9: #{lightgcn_forward.14} parent=0 // pred_fallthru
    _
  // Predicated region
  $region10: #{lightgcn_forward.14} parent=0 // pred_check
    _
  $region11: #{lightgcn_forward.14} parent=0 // pred_check_branch
    %13 = sbr.rel (0) target = $region13
  $region12: #{lightgcn_forward.14} parent=0 // pred_region
    _
  $region13: #{lightgcn_forward.14} parent=0 // pred_fallthru
    _
  %p15 = scmp.eq.s32.totalorder 0, 0
  // Predicated region
  $region14: #{lightgcn_forward.14} parent=0 // pred_check
    %p16 = pneg %p15
  $region15: #{lightgcn_forward.14} parent=0 // pred_check_branch
    %18 = sbr.rel (%p16) target = $region17
  $region16: #{lightgcn_forward.14} parent=0 // pred_region
    %19 = vst [vmem:[#allocation2] sm:$0xff] 0.0
    %20 = vst [vmem:[#allocation2 + $0x8] sm:$0xff] 0.0
    %21 = vst [vmem:[#allocation2 + $0x10] sm:$0xff] 0.0
    %22 = vst [vmem:[#allocation2 + $0x18] sm:$0xff] 0.0
    %23 = vst [vmem:[#allocation2 + $0x20] sm:$0xff] 0.0
    %24 = vst [vmem:[#allocation2 + $0x28] sm:$0xff] 0.0
    %25 = vst [vmem:[#allocation2 + $0x30] sm:$0xff] 0.0
    %26 = vst [vmem:[#allocation2 + $0x38] sm:$0xff] 0.0
    %27 = vst [vmem:[#allocation2 + $0x40] sm:$0xff] 0.0
    %28 = vst [vmem:[#allocation2 + $0x48] sm:$0xff] 0.0
    %29 = vst [vmem:[#allocation2 + $0x50] sm:$0xff] 0.0
    %30 = vst [vmem:[#allocation2 + $0x58] sm:$0xff] 0.0
    %31 = vst [vmem:[#allocation2 + $0x60] sm:$0xff] 0.0
    %32 = vst [vmem:[#allocation2 + $0x68] sm:$0xff] 0.0
    %33 = vst [vmem:[#allocation2 + $0x70] sm:$0xff] 0.0
    %34 = vst [vmem:[#allocation2 + $0x78] sm:$0xff] 0.0
  $region17: #{lightgcn_forward.14} parent=0 // pred_fallthru
    _
  %v35 = vld [vmem:[#allocation2] sm:$0xff]
  %v36 = vld [vmem:[#allocation2 + $0x8] sm:$0xff]
  %v37 = vld [vmem:[#allocation2 + $0x10] sm:$0xff]
  %v38 = vld [vmem:[#allocation2 + $0x18] sm:$0xff]
  %v39 = vld [vmem:[#allocation2 + $0x20] sm:$0xff]
  %v40 = vld [vmem:[#allocation2 + $0x28] sm:$0xff]
  %v41 = vld [vmem:[#allocation2 + $0x30] sm:$0xff]
  %v42 = vld [vmem:[#allocation2 + $0x38] sm:$0xff]
  %v43 = vld [vmem:[#allocation2 + $0x40] sm:$0xff]
  %v44 = vld [vmem:[#allocation2 + $0x48] sm:$0xff]
  %v45 = vld [vmem:[#allocation2 + $0x50] sm:$0xff]
  %v46 = vld [vmem:[#allocation2 + $0x58] sm:$0xff]
  %v47 = vld [vmem:[#allocation2 + $0x60] sm:$0xff]
  %v48 = vld [vmem:[#allocation2 + $0x68] sm:$0xff]
  %v49 = vld [vmem:[#allocation2 + $0x70] sm:$0xff]
  %v50 = vld [vmem:[#allocation2 + $0x78] sm:$0xff]
  %v51 = vld [vmem:[%s0] sm:$0xf]
  %v52 = vld [vmem:[%s0 + $0x4] sm:$0xf]
  %v53 = vld [vmem:[%s0 + $0x8] sm:$0xf]
  %v54 = vld [vmem:[%s0 + $0xc] sm:$0xf]
  %v55 = vld [vmem:[%s0 + $0x10] sm:$0xf]
  %v56 = vld [vmem:[%s0 + $0x14] sm:$0xf]
  %v57 = vld [vmem:[%s0 + $0x18] sm:$0xf]
  %v58 = vld [vmem:[%s0 + $0x1c] sm:$0xf]
  %v59 = vld [vmem:[%s0 + $0x20] sm:$0xf]
  %v60 = vld [vmem:[%s0 + $0x24] sm:$0xf]
  %v61 = vld [vmem:[%s0 + $0x28] sm:$0xf]
  %v62 = vld [vmem:[%s0 + $0x2c] sm:$0xf]
  %v63 = vld [vmem:[%s0 + $0x30] sm:$0xf]
  %v64 = vld [vmem:[%s0 + $0x34] sm:$0xf]
  %v65 = vld [vmem:[%s0 + $0x38] sm:$0xf]
  %v66 = vld [vmem:[%s0 + $0x3c] sm:$0xf]
  %v67 = vld [vmem:[%s1] sm:$0xf]
  %v68 = vld [vmem:[%s1 + $0x4] sm:$0xf]
  %v69 = vld [vmem:[%s1 + $0x8] sm:$0xf]
  %v70 = vld [vmem:[%s1 + $0xc] sm:$0xf]
  %v71 = vld [vmem:[%s1 + $0x10] sm:$0xf]
  %v72 = vld [vmem:[%s1 + $0x14] sm:$0xf]
  %v73 = vld [vmem:[%s1 + $0x18] sm:$0xf]
  %v74 = vld [vmem:[%s1 + $0x1c] sm:$0xf]
  %v75 = vld [vmem:[%s1 + $0x20] sm:$0xf]
  %v76 = vld [vmem:[%s1 + $0x24] sm:$0xf]
  %v77 = vld [vmem:[%s1 + $0x28] sm:$0xf]
  %v78 = vld [vmem:[%s1 + $0x2c] sm:$0xf]
  %v79 = vld [vmem:[%s1 + $0x30] sm:$0xf]
  %v80 = vld [vmem:[%s1 + $0x34] sm:$0xf]
  %v81 = vld [vmem:[%s1 + $0x38] sm:$0xf]
  %v82 = vld [vmem:[%s1 + $0x3c] sm:$0xf]
  %v99 = vunpack.c.l.b16 %v51
  %v100 = vunpack.c.l.b16 %v52
  %v101 = vunpack.c.l.b16 %v53
  %v102 = vunpack.c.l.b16 %v54
  %v103 = vunpack.c.l.b16 %v55
  %v104 = vunpack.c.l.b16 %v56
  %v105 = vunpack.c.l.b16 %v57
  %v106 = vunpack.c.l.b16 %v58
  %v107 = vunpack.c.l.b16 %v59
  %v108 = vunpack.c.l.b16 %v60
  %v109 = vunpack.c.l.b16 %v61
  %v110 = vunpack.c.l.b16 %v62
  %v111 = vunpack.c.l.b16 %v63
  %v112 = vunpack.c.l.b16 %v64
  %v113 = vunpack.c.l.b16 %v65
  %v114 = vunpack.c.l.b16 %v66
  %v115 = vpack.c.b16 %v100, %v99
  %v116 = vpack.c.b16 %v102, %v101
  %v117 = vpack.c.b16 %v104, %v103
  %v118 = vpack.c.b16 %v106, %v105
  %v119 = vpack.c.b16 %v108, %v107
  %v120 = vpack.c.b16 %v110, %v109
  %v121 = vpack.c.b16 %v112, %v111
  %v122 = vpack.c.b16 %v114, %v113
  %v147 = vunpack.c.l.b16 %v67
  %v148 = vunpack.c.l.b16 %v68
  %v149 = vunpack.c.l.b16 %v69
  %v150 = vunpack.c.l.b16 %v70
  %v151 = vunpack.c.l.b16 %v71
  %v152 = vunpack.c.l.b16 %v72
  %v153 = vunpack.c.l.b16 %v73
  %v154 = vunpack.c.l.b16 %v74
  %v155 = vunpack.c.l.b16 %v75
  %v156 = vunpack.c.l.b16 %v76
  %v157 = vunpack.c.l.b16 %v77
  %v158 = vunpack.c.l.b16 %v78
  %v159 = vunpack.c.l.b16 %v79
  %v160 = vunpack.c.l.b16 %v80
  %v161 = vunpack.c.l.b16 %v81
  %v162 = vunpack.c.l.b16 %v82
  %v163 = vpack.c.b16 %v148, %v147
  %v164 = vpack.c.b16 %v150, %v149
  %v165 = vpack.c.b16 %v152, %v151
  %v166 = vpack.c.b16 %v154, %v153
  %v167 = vpack.c.b16 %v156, %v155
  %v168 = vpack.c.b16 %v158, %v157
  %v169 = vpack.c.b16 %v160, %v159
  %v170 = vpack.c.b16 %v162, %v161
  %179 = vmatprep.subr.bf16.mxu0 0
  %180 = vmatpush1.bf16.msra.mxu0 %v170
  %181 = vmatprep.subr.bf16.mxu0 0
  %182 = vmatpush1.bf16.msra.mxu0 %v169
  %183 = vmatprep.subr.bf16.mxu0 0
  %184 = vmatpush1.bf16.msra.mxu0 %v168
  %185 = vmatprep.subr.bf16.mxu0 0
  %186 = vmatpush1.bf16.msra.mxu0 %v167
  %187 = vmatprep.subr.bf16.mxu0 0
  %188 = vmatpush1.bf16.msra.mxu0 %v166
  %189 = vmatprep.subr.bf16.mxu0 0
  %190 = vmatpush1.bf16.msra.mxu0 %v165
  %191 = vmatprep.subr.bf16.mxu0 0
  %192 = vmatpush1.bf16.msra.mxu0 %v164
  %193 = vmatprep.subr.bf16.mxu0 0
  %194 = vmatpush1.bf16.msra.mxu0 %v163
  %195 = vmatprep.subr.bf16.mxu0 0
  %196 = vmatpush2.bf16.msra.mxu0 0
  %197 = vmatprep.subr.bf16.mxu0 0
  %198 = vmatpush2.bf16.msra.mxu0 0
  %199 = vmatprep.subr.bf16.mxu0 0
  %200 = vmatpush2.bf16.msra.mxu0 0
  %201 = vmatprep.subr.bf16.mxu0 0
  %202 = vmatpush2.bf16.msra.mxu0 0
  %203 = vmatprep.subr.bf16.mxu0 0
  %204 = vmatpush2.bf16.msra.mxu0 0
  %205 = vmatprep.subr.bf16.mxu0 0
  %206 = vmatpush2.bf16.msra.mxu0 0
  %207 = vmatprep.subr.bf16.mxu0 0
  %208 = vmatpush2.bf16.msra.mxu0 0
  %209 = vmatprep.subr.bf16.mxu0 0
  %210 = vmatpush2.bf16.msra.mxu0 0
  %211 = vmatprep.mubr.bf16.mxu0 0
  %212 = vmatmul.mubr.bf16.gmra.mxu0 %v115
  %v213 = vpop.f32.mrf.mxu0
  %v214 = vadd.f32 0.0, %v213
  %v215 = vpop.f32.mrf.mxu0
  %v216 = vpop.f32.mrf.mxu0
  %v217 = vadd.f32 0.0, %v216
  %v218 = vpop.f32.mrf.mxu0
  %219 = vmatprep.mubr.bf16.mxu0 0
  %220 = vmatmul.mubr.bf16.gmra.mxu0 %v116
  %v221 = vpop.f32.mrf.mxu0
  %v222 = vadd.f32 0.0, %v221
  %v223 = vpop.f32.mrf.mxu0
  %v224 = vpop.f32.mrf.mxu0
  %v225 = vadd.f32 0.0, %v224
  %v226 = vpop.f32.mrf.mxu0
  %227 = vmatprep.mubr.bf16.mxu0 0
  %228 = vmatmul.mubr.bf16.gmra.mxu0 %v117
  %v229 = vpop.f32.mrf.mxu0
  %v230 = vadd.f32 0.0, %v229
  %v231 = vpop.f32.mrf.mxu0
  %v232 = vpop.f32.mrf.mxu0
  %v233 = vadd.f32 0.0, %v232
  %v234 = vpop.f32.mrf.mxu0
  %235 = vmatprep.mubr.bf16.mxu0 0
  %236 = vmatmul.mubr.bf16.gmra.mxu0 %v118
  %v237 = vpop.f32.mrf.mxu0
  %v238 = vadd.f32 0.0, %v237
  %v239 = vpop.f32.mrf.mxu0
  %v240 = vpop.f32.mrf.mxu0
  %v241 = vadd.f32 0.0, %v240
  %v242 = vpop.f32.mrf.mxu0
  %243 = vmatprep.mubr.bf16.mxu0 0
  %244 = vmatmul.mubr.bf16.gmra.mxu0 %v119
  %v245 = vpop.f32.mrf.mxu0
  %v246 = vadd.f32 0.0, %v245
  %v247 = vpop.f32.mrf.mxu0
  %v248 = vpop.f32.mrf.mxu0
  %v249 = vadd.f32 0.0, %v248
  %v250 = vpop.f32.mrf.mxu0
  %251 = vmatprep.mubr.bf16.mxu0 0
  %252 = vmatmul.mubr.bf16.gmra.mxu0 %v120
  %v253 = vpop.f32.mrf.mxu0
  %v254 = vadd.f32 0.0, %v253
  %v255 = vpop.f32.mrf.mxu0
  %v256 = vpop.f32.mrf.mxu0
  %v257 = vadd.f32 0.0, %v256
  %v258 = vpop.f32.mrf.mxu0
  %259 = vmatprep.mubr.bf16.mxu0 0
  %260 = vmatmul.mubr.bf16.gmra.mxu0 %v121
  %v261 = vpop.f32.mrf.mxu0
  %v262 = vadd.f32 0.0, %v261
  %v263 = vpop.f32.mrf.mxu0
  %v264 = vpop.f32.mrf.mxu0
  %v265 = vadd.f32 0.0, %v264
  %v266 = vpop.f32.mrf.mxu0
  %267 = vmatprep.mubr.bf16.mxu0 0
  %268 = vmatmul.mubr.bf16.gmra.mxu0 %v122
  %v269 = vpop.f32.mrf.mxu0
  %v270 = vadd.f32 0.0, %v269
  %v271 = vpop.f32.mrf.mxu0
  %v272 = vpop.f32.mrf.mxu0
  %v273 = vadd.f32 0.0, %v272
  %v274 = vpop.f32.mrf.mxu0
  %275 = vdwg.mxu0
  %v276 = vadd.f32 %v35, %v214
  %v277 = vadd.f32 %v36, %v217
  %v278 = vadd.f32 %v37, %v222
  %v279 = vadd.f32 %v38, %v225
  %v280 = vadd.f32 %v39, %v230
  %v281 = vadd.f32 %v40, %v233
  %v282 = vadd.f32 %v41, %v238
  %v283 = vadd.f32 %v42, %v241
  %v284 = vadd.f32 %v43, %v246
  %v285 = vadd.f32 %v44, %v249
  %v286 = vadd.f32 %v45, %v254
  %v287 = vadd.f32 %v46, %v257
  %v288 = vadd.f32 %v47, %v262
  %v289 = vadd.f32 %v48, %v265
  %v290 = vadd.f32 %v49, %v270
  %v291 = vadd.f32 %v50, %v273
  %292 = vst [vmem:[#allocation2] sm:$0xff] %v276
  %293 = vst [vmem:[#allocation2 + $0x8] sm:$0xff] %v277
  %294 = vst [vmem:[#allocation2 + $0x10] sm:$0xff] %v278
  %295 = vst [vmem:[#allocation2 + $0x18] sm:$0xff] %v279
  %296 = vst [vmem:[#allocation2 + $0x20] sm:$0xff] %v280
  %297 = vst [vmem:[#allocation2 + $0x28] sm:$0xff] %v281
  %298 = vst [vmem:[#allocation2 + $0x30] sm:$0xff] %v282
  %299 = vst [vmem:[#allocation2 + $0x38] sm:$0xff] %v283
  %300 = vst [vmem:[#allocation2 + $0x40] sm:$0xff] %v284
  %301 = vst [vmem:[#allocation2 + $0x48] sm:$0xff] %v285
  %302 = vst [vmem:[#allocation2 + $0x50] sm:$0xff] %v286
  %303 = vst [vmem:[#allocation2 + $0x58] sm:$0xff] %v287
  %304 = vst [vmem:[#allocation2 + $0x60] sm:$0xff] %v288
  %305 = vst [vmem:[#allocation2 + $0x68] sm:$0xff] %v289
  %306 = vst [vmem:[#allocation2 + $0x70] sm:$0xff] %v290
  %307 = vst [vmem:[#allocation2 + $0x78] sm:$0xff] %v291
  // Predicated region
  $region18: #{lightgcn_forward.14} parent=0 // pred_check
    %p308 = pneg %p15
  $region19: #{lightgcn_forward.14} parent=0 // pred_check_branch
    %310 = sbr.rel (%p308) target = $region21
  $region20: #{lightgcn_forward.14} parent=0 // pred_region
    %v311 = vld [vmem:[#allocation2] sm:$0xff]
    %v312 = vld [vmem:[#allocation2 + $0x8] sm:$0xff]
    %v313 = vld [vmem:[#allocation2 + $0x10] sm:$0xff]
    %v314 = vld [vmem:[#allocation2 + $0x18] sm:$0xff]
    %v315 = vld [vmem:[#allocation2 + $0x20] sm:$0xff]
    %v316 = vld [vmem:[#allocation2 + $0x28] sm:$0xff]
    %v317 = vld [vmem:[#allocation2 + $0x30] sm:$0xff]
    %v318 = vld [vmem:[#allocation2 + $0x38] sm:$0xff]
    %v319 = vld [vmem:[#allocation2 + $0x40] sm:$0xff]
    %v320 = vld [vmem:[#allocation2 + $0x48] sm:$0xff]
    %v321 = vld [vmem:[#allocation2 + $0x50] sm:$0xff]
    %v322 = vld [vmem:[#allocation2 + $0x58] sm:$0xff]
    %v323 = vld [vmem:[#allocation2 + $0x60] sm:$0xff]
    %v324 = vld [vmem:[#allocation2 + $0x68] sm:$0xff]
    %v325 = vld [vmem:[#allocation2 + $0x70] sm:$0xff]
    %v326 = vld [vmem:[#allocation2 + $0x78] sm:$0xff]
    %v327 = vld [vmem:[%s2] sm:$0xff]
    %v328 = vld [vmem:[%s2 + $0x8] sm:$0xff]
    %v329 = vld [vmem:[%s2 + $0x10] sm:$0xff]
    %v330 = vld [vmem:[%s2 + $0x18] sm:$0xff]
    %v331 = vld [vmem:[%s2 + $0x20] sm:$0xff]
    %v332 = vld [vmem:[%s2 + $0x28] sm:$0xff]
    %v333 = vld [vmem:[%s2 + $0x30] sm:$0xff]
    %v334 = vld [vmem:[%s2 + $0x38] sm:$0xff]
    %v335 = vld [vmem:[%s2 + $0x40] sm:$0xff]
    %v336 = vld [vmem:[%s2 + $0x48] sm:$0xff]
    %v337 = vld [vmem:[%s2 + $0x50] sm:$0xff]
    %v338 = vld [vmem:[%s2 + $0x58] sm:$0xff]
    %v339 = vld [vmem:[%s2 + $0x60] sm:$0xff]
    %v340 = vld [vmem:[%s2 + $0x68] sm:$0xff]
    %v341 = vld [vmem:[%s2 + $0x70] sm:$0xff]
    %v342 = vld [vmem:[%s2 + $0x78] sm:$0xff]
    %v343 = vadd.f32 %v327, %v311
    %v344 = vadd.f32 %v328, %v312
    %v345 = vadd.f32 %v329, %v313
    %v346 = vadd.f32 %v330, %v314
    %v347 = vadd.f32 %v331, %v315
    %v348 = vadd.f32 %v332, %v316
    %v349 = vadd.f32 %v333, %v317
    %v350 = vadd.f32 %v334, %v318
    %v351 = vadd.f32 %v335, %v319
    %v352 = vadd.f32 %v336, %v320
    %v353 = vadd.f32 %v337, %v321
    %v354 = vadd.f32 %v338, %v322
    %v355 = vadd.f32 %v339, %v323
    %v356 = vadd.f32 %v340, %v324
    %v357 = vadd.f32 %v341, %v325
    %v358 = vadd.f32 %v342, %v326
    %v359 = vmul.f32 %v343, 0.25
    %v360 = vmul.f32 %v344, 0.25
    %v361 = vmul.f32 %v345, 0.25
    %v362 = vmul.f32 %v346, 0.25
    %v363 = vmul.f32 %v347, 0.25
    %v364 = vmul.f32 %v348, 0.25
    %v365 = vmul.f32 %v349, 0.25
    %v366 = vmul.f32 %v350, 0.25
    %v367 = vmul.f32 %v351, 0.25
    %v368 = vmul.f32 %v352, 0.25
    %v369 = vmul.f32 %v353, 0.25
    %v370 = vmul.f32 %v354, 0.25
    %v371 = vmul.f32 %v355, 0.25
    %v372 = vmul.f32 %v356, 0.25
    %v373 = vmul.f32 %v357, 0.25
    %v374 = vmul.f32 %v358, 0.25
    %375 = vst [vmem:[%s3] sm:$0xff] %v359
    %376 = vst [vmem:[%s3 + $0x8] sm:$0xff] %v360
    %377 = vst [vmem:[%s3 + $0x10] sm:$0xff] %v361
    %378 = vst [vmem:[%s3 + $0x18] sm:$0xff] %v362
    %379 = vst [vmem:[%s3 + $0x20] sm:$0xff] %v363
    %380 = vst [vmem:[%s3 + $0x28] sm:$0xff] %v364
    %381 = vst [vmem:[%s3 + $0x30] sm:$0xff] %v365
    %382 = vst [vmem:[%s3 + $0x38] sm:$0xff] %v366
    %383 = vst [vmem:[%s3 + $0x40] sm:$0xff] %v367
    %384 = vst [vmem:[%s3 + $0x48] sm:$0xff] %v368
    %385 = vst [vmem:[%s3 + $0x50] sm:$0xff] %v369
    %386 = vst [vmem:[%s3 + $0x58] sm:$0xff] %v370
    %387 = vst [vmem:[%s3 + $0x60] sm:$0xff] %v371
    %388 = vst [vmem:[%s3 + $0x68] sm:$0xff] %v372
    %389 = vst [vmem:[%s3 + $0x70] sm:$0xff] %v373
    %390 = vst [vmem:[%s3 + $0x78] sm:$0xff] %v374
  $region21: #{lightgcn_forward.14} parent=0 // pred_fallthru
    _
  // Predicated region
  $region22: #{lightgcn_forward.14} parent=0 // pred_check
    _
  $region23: #{lightgcn_forward.14} parent=0 // pred_check_branch
    %392 = sbr.rel (0) target = $region25
  $region24: #{lightgcn_forward.14} parent=0 // pred_region
    _
  $region25: #{lightgcn_forward.14} parent=0 // pred_fallthru
    _
  // Predicated region
  $region26: #{lightgcn_forward.14} parent=0 // pred_check
    _
  $region27: #{lightgcn_forward.14} parent=0 // pred_check_branch
    %394 = sbr.rel (0) target = $region29
  $region28: #{lightgcn_forward.14} parent=0 // pred_region
    _
  $region29: #{lightgcn_forward.14} parent=0 // pred_fallthru
    _

// kernel: lightgcn_forward.9
$region0: #{lightgcn_forward.9}
  #allocation0 [shape = 'u32[]', space=smem, size = 0x4, offset = 0x4, fixed_abs, tag = 'smem constant byte address 0x4 - core index']
  #allocation1 [shape = 'u32[144,128]{1,0:T(1,128)}', space=vmem, size = 0x12000, scoped, tag = 'internal scratch']
  %s0 = inlined_call_operand.vmem [shape: f32[128,128], index: 0, kind: input, shape index: {}, may-alias: {0,4}]
  %s1 = inlined_call_operand.vmem [shape: bf16[128,128], index: 1, kind: input, shape index: {}]
  %s2 = inlined_call_operand.vmem [shape: bf16[128,128], index: 2, kind: input, shape index: {}]
  %s3 = inlined_call_operand.vmem [shape: f32[1,128], index: 3, kind: input, shape index: {}]
  %s4 = inlined_call_operand.vmem [shape: f32[128,128], index: 4, kind: output, shape index: {0}, may-alias: {0,4}]
  %s5 = inlined_call_operand.vmem [shape: bf16[128,128], index: 5, kind: output, shape index: {1}]
  %6 = xla_tuple %s4, %s5
  %s7 = sld [smem:[#allocation0]]
  $region34: #{lightgcn_forward.9} parent=0
    _
  %s9 = ssub.s32 1, %s7
  %s10 = scalar_select 0, %s9, %s7
  // Predicated region
  $region2: #{lightgcn_forward.9} parent=0 // pred_check
    _
  $region3: #{lightgcn_forward.9} parent=0 // pred_check_branch
    %12 = sbr.rel (0) target = $region5
  $region4: #{lightgcn_forward.9} parent=0 // pred_region
    _
  $region5: #{lightgcn_forward.9} parent=0 // pred_fallthru
    _
  // Predicated region
  $region6: #{lightgcn_forward.9} parent=0 // pred_check
    _
  $region7: #{lightgcn_forward.9} parent=0 // pred_check_branch
    %14 = sbr.rel (0) target = $region9
  $region8: #{lightgcn_forward.9} parent=0 // pred_region
    _
  $region9: #{lightgcn_forward.9} parent=0 // pred_fallthru
    _
  // Predicated region
  $region10: #{lightgcn_forward.9} parent=0 // pred_check
    _
  $region11: #{lightgcn_forward.9} parent=0 // pred_check_branch
    %16 = sbr.rel (0) target = $region13
  $region12: #{lightgcn_forward.9} parent=0 // pred_region
    _
  $region13: #{lightgcn_forward.9} parent=0 // pred_fallthru
    _
  // Predicated region
  $region14: #{lightgcn_forward.9} parent=0 // pred_check
    _
  $region15: #{lightgcn_forward.9} parent=0 // pred_check_branch
    %18 = sbr.rel (0) target = $region17
  $region16: #{lightgcn_forward.9} parent=0 // pred_region
    _
  $region17: #{lightgcn_forward.9} parent=0 // pred_fallthru
    _
  %v20 = vld [vmem:[%s0] sm:$0xff]
  %v21 = vld [vmem:[%s0 + $0x8] sm:$0xff]
  %v22 = vld [vmem:[%s0 + $0x10] sm:$0xff]
  %v23 = vld [vmem:[%s0 + $0x18] sm:$0xff]
  %v24 = vld [vmem:[%s0 + $0x20] sm:$0xff]
  %v25 = vld [vmem:[%s0 + $0x28] sm:$0xff]
  %v26 = vld [vmem:[%s0 + $0x30] sm:$0xff]
  %v27 = vld [vmem:[%s0 + $0x38] sm:$0xff]
  %v28 = vld [vmem:[%s0 + $0x40] sm:$0xff]
  %v29 = vld [vmem:[%s0 + $0x48] sm:$0xff]
  %v30 = vld [vmem:[%s0 + $0x50] sm:$0xff]
  %v31 = vld [vmem:[%s0 + $0x58] sm:$0xff]
  %v32 = vld [vmem:[%s0 + $0x60] sm:$0xff]
  %v33 = vld [vmem:[%s0 + $0x68] sm:$0xff]
  %v34 = vld [vmem:[%s0 + $0x70] sm:$0xff]
  %v35 = vld [vmem:[%s0 + $0x78] sm:$0xff]
  %v36 = vld [vmem:[%s1] sm:$0xf]
  %v37 = vld [vmem:[%s1 + $0x4] sm:$0xf]
  %v38 = vld [vmem:[%s1 + $0x8] sm:$0xf]
  %v39 = vld [vmem:[%s1 + $0xc] sm:$0xf]
  %v40 = vld [vmem:[%s1 + $0x10] sm:$0xf]
  %v41 = vld [vmem:[%s1 + $0x14] sm:$0xf]
  %v42 = vld [vmem:[%s1 + $0x18] sm:$0xf]
  %v43 = vld [vmem:[%s1 + $0x1c] sm:$0xf]
  %v44 = vld [vmem:[%s1 + $0x20] sm:$0xf]
  %v45 = vld [vmem:[%s1 + $0x24] sm:$0xf]
  %v46 = vld [vmem:[%s1 + $0x28] sm:$0xf]
  %v47 = vld [vmem:[%s1 + $0x2c] sm:$0xf]
  %v48 = vld [vmem:[%s1 + $0x30] sm:$0xf]
  %v49 = vld [vmem:[%s1 + $0x34] sm:$0xf]
  %v50 = vld [vmem:[%s1 + $0x38] sm:$0xf]
  %v51 = vld [vmem:[%s1 + $0x3c] sm:$0xf]
  %v52 = vld [vmem:[%s2] sm:$0xf]
  %v53 = vld [vmem:[%s2 + $0x4] sm:$0xf]
  %v54 = vld [vmem:[%s2 + $0x8] sm:$0xf]
  %v55 = vld [vmem:[%s2 + $0xc] sm:$0xf]
  %v56 = vld [vmem:[%s2 + $0x10] sm:$0xf]
  %v57 = vld [vmem:[%s2 + $0x14] sm:$0xf]
  %v58 = vld [vmem:[%s2 + $0x18] sm:$0xf]
  %v59 = vld [vmem:[%s2 + $0x1c] sm:$0xf]
  %v60 = vld [vmem:[%s2 + $0x20] sm:$0xf]
  %v61 = vld [vmem:[%s2 + $0x24] sm:$0xf]
  %v62 = vld [vmem:[%s2 + $0x28] sm:$0xf]
  %v63 = vld [vmem:[%s2 + $0x2c] sm:$0xf]
  %v64 = vld [vmem:[%s2 + $0x30] sm:$0xf]
  %v65 = vld [vmem:[%s2 + $0x34] sm:$0xf]
  %v66 = vld [vmem:[%s2 + $0x38] sm:$0xf]
  %v67 = vld [vmem:[%s2 + $0x3c] sm:$0xf]
  %v84 = vunpack.c.l.b16 %v36
  %v85 = vunpack.c.l.b16 %v37
  %v86 = vunpack.c.l.b16 %v38
  %v87 = vunpack.c.l.b16 %v39
  %v88 = vunpack.c.l.b16 %v40
  %v89 = vunpack.c.l.b16 %v41
  %v90 = vunpack.c.l.b16 %v42
  %v91 = vunpack.c.l.b16 %v43
  %v92 = vunpack.c.l.b16 %v44
  %v93 = vunpack.c.l.b16 %v45
  %v94 = vunpack.c.l.b16 %v46
  %v95 = vunpack.c.l.b16 %v47
  %v96 = vunpack.c.l.b16 %v48
  %v97 = vunpack.c.l.b16 %v49
  %v98 = vunpack.c.l.b16 %v50
  %v99 = vunpack.c.l.b16 %v51
  %v100 = vpack.c.b16 %v85, %v84
  %v101 = vpack.c.b16 %v87, %v86
  %v102 = vpack.c.b16 %v89, %v88
  %v103 = vpack.c.b16 %v91, %v90
  %v104 = vpack.c.b16 %v93, %v92
  %v105 = vpack.c.b16 %v95, %v94
  %v106 = vpack.c.b16 %v97, %v96
  %v107 = vpack.c.b16 %v99, %v98
  %v132 = vunpack.c.l.b16 %v52
  %v133 = vunpack.c.l.b16 %v53
  %v134 = vunpack.c.l.b16 %v54
  %v135 = vunpack.c.l.b16 %v55
  %v136 = vunpack.c.l.b16 %v56
  %v137 = vunpack.c.l.b16 %v57
  %v138 = vunpack.c.l.b16 %v58
  %v139 = vunpack.c.l.b16 %v59
  %v140 = vunpack.c.l.b16 %v60
  %v141 = vunpack.c.l.b16 %v61
  %v142 = vunpack.c.l.b16 %v62
  %v143 = vunpack.c.l.b16 %v63
  %v144 = vunpack.c.l.b16 %v64
  %v145 = vunpack.c.l.b16 %v65
  %v146 = vunpack.c.l.b16 %v66
  %v147 = vunpack.c.l.b16 %v67
  %v148 = vpack.c.b16 %v133, %v132
  %v149 = vpack.c.b16 %v135, %v134
  %v150 = vpack.c.b16 %v137, %v136
  %v151 = vpack.c.b16 %v139, %v138
  %v152 = vpack.c.b16 %v141, %v140
  %v153 = vpack.c.b16 %v143, %v142
  %v154 = vpack.c.b16 %v145, %v144
  %v155 = vpack.c.b16 %v147, %v146
  %164 = vmatprep.subr.bf16.mxu0 0
  %165 = vmatpush1.bf16.msra.mxu0 %v155
  %166 = vmatprep.subr.bf16.mxu0 0
  %167 = vmatpush1.bf16.msra.mxu0 %v154
  %168 = vmatprep.subr.bf16.mxu0 0
  %169 = vmatpush1.bf16.msra.mxu0 %v153
  %170 = vmatprep.subr.bf16.mxu0 0
  %171 = vmatpush1.bf16.msra.mxu0 %v152
  %172 = vmatprep.subr.bf16.mxu0 0
  %173 = vmatpush1.bf16.msra.mxu0 %v151
  %174 = vmatprep.subr.bf16.mxu0 0
  %175 = vmatpush1.bf16.msra.mxu0 %v150
  %176 = vmatprep.subr.bf16.mxu0 0
  %177 = vmatpush1.bf16.msra.mxu0 %v149
  %178 = vmatprep.subr.bf16.mxu0 0
  %179 = vmatpush1.bf16.msra.mxu0 %v148
  %180 = vmatprep.subr.bf16.mxu0 0
  %181 = vmatpush2.bf16.msra.mxu0 0
  %182 = vmatprep.subr.bf16.mxu0 0
  %183 = vmatpush2.bf16.msra.mxu0 0
  %184 = vmatprep.subr.bf16.mxu0 0
  %185 = vmatpush2.bf16.msra.mxu0 0
  %186 = vmatprep.subr.bf16.mxu0 0
  %187 = vmatpush2.bf16.msra.mxu0 0
  %188 = vmatprep.subr.bf16.mxu0 0
  %189 = vmatpush2.bf16.msra.mxu0 0
  %190 = vmatprep.subr.bf16.mxu0 0
  %191 = vmatpush2.bf16.msra.mxu0 0
  %192 = vmatprep.subr.bf16.mxu0 0
  %193 = vmatpush2.bf16.msra.mxu0 0
  %194 = vmatprep.subr.bf16.mxu0 0
  %195 = vmatpush2.bf16.msra.mxu0 0
  %196 = vmatprep.mubr.bf16.mxu0 0
  %197 = vmatmul.mubr.bf16.gmra.mxu0 %v100
  %v198 = vpop.f32.mrf.mxu0
  %v199 = vadd.f32 0.0, %v198
  %v200 = vpop.f32.mrf.mxu0
  %v201 = vpop.f32.mrf.mxu0
  %v202 = vadd.f32 0.0, %v201
  %v203 = vpop.f32.mrf.mxu0
  %204 = vmatprep.mubr.bf16.mxu0 0
  %205 = vmatmul.mubr.bf16.gmra.mxu0 %v101
  %v206 = vpop.f32.mrf.mxu0
  %v207 = vadd.f32 0.0, %v206
  %v208 = vpop.f32.mrf.mxu0
  %v209 = vpop.f32.mrf.mxu0
  %v210 = vadd.f32 0.0, %v209
  %v211 = vpop.f32.mrf.mxu0
  %212 = vmatprep.mubr.bf16.mxu0 0
  %213 = vmatmul.mubr.bf16.gmra.mxu0 %v102
  %v214 = vpop.f32.mrf.mxu0
  %v215 = vadd.f32 0.0, %v214
  %v216 = vpop.f32.mrf.mxu0
  %v217 = vpop.f32.mrf.mxu0
  %v218 = vadd.f32 0.0, %v217
  %v219 = vpop.f32.mrf.mxu0
  %220 = vmatprep.mubr.bf16.mxu0 0
  %221 = vmatmul.mubr.bf16.gmra.mxu0 %v103
  %v222 = vpop.f32.mrf.mxu0
  %v223 = vadd.f32 0.0, %v222
  %v224 = vpop.f32.mrf.mxu0
  %v225 = vpop.f32.mrf.mxu0
  %v226 = vadd.f32 0.0, %v225
  %v227 = vpop.f32.mrf.mxu0
  %228 = vmatprep.mubr.bf16.mxu0 0
  %229 = vmatmul.mubr.bf16.gmra.mxu0 %v104
  %v230 = vpop.f32.mrf.mxu0
  %v231 = vadd.f32 0.0, %v230
  %v232 = vpop.f32.mrf.mxu0
  %v233 = vpop.f32.mrf.mxu0
  %v234 = vadd.f32 0.0, %v233
  %v235 = vpop.f32.mrf.mxu0
  %236 = vmatprep.mubr.bf16.mxu0 0
  %237 = vmatmul.mubr.bf16.gmra.mxu0 %v105
  %v238 = vpop.f32.mrf.mxu0
  %v239 = vadd.f32 0.0, %v238
  %v240 = vpop.f32.mrf.mxu0
  %v241 = vpop.f32.mrf.mxu0
  %v242 = vadd.f32 0.0, %v241
  %v243 = vpop.f32.mrf.mxu0
  %244 = vmatprep.mubr.bf16.mxu0 0
  %245 = vmatmul.mubr.bf16.gmra.mxu0 %v106
  %v246 = vpop.f32.mrf.mxu0
  %v247 = vadd.f32 0.0, %v246
  %v248 = vpop.f32.mrf.mxu0
  %v249 = vpop.f32.mrf.mxu0
  %v250 = vadd.f32 0.0, %v249
  %v251 = vpop.f32.mrf.mxu0
  %252 = vmatprep.mubr.bf16.mxu0 0
  %253 = vmatmul.mubr.bf16.gmra.mxu0 %v107
  %v254 = vpop.f32.mrf.mxu0
  %v255 = vadd.f32 0.0, %v254
  %v256 = vpop.f32.mrf.mxu0
  %v257 = vpop.f32.mrf.mxu0
  %v258 = vadd.f32 0.0, %v257
  %v259 = vpop.f32.mrf.mxu0
  %260 = vdwg.mxu0
  %v261 = vadd.f32 %v20, %v199
  %v262 = vadd.f32 %v21, %v202
  %v263 = vadd.f32 %v22, %v207
  %v264 = vadd.f32 %v23, %v210
  %v265 = vadd.f32 %v24, %v215
  %v266 = vadd.f32 %v25, %v218
  %v267 = vadd.f32 %v26, %v223
  %v268 = vadd.f32 %v27, %v226
  %v269 = vadd.f32 %v28, %v231
  %v270 = vadd.f32 %v29, %v234
  %v271 = vadd.f32 %v30, %v239
  %v272 = vadd.f32 %v31, %v242
  %v273 = vadd.f32 %v32, %v247
  %v274 = vadd.f32 %v33, %v250
  %v275 = vadd.f32 %v34, %v255
  %v276 = vadd.f32 %v35, %v258
  %v277 = vld [vmem:[%s3] sm:$0x1]
  %v279 = vlaneseq
  %v280 = vshrl.u32 %v279, 7
  %v281 = vsub.s32 0, %v280
  %v282 = vrot.slane %v277, %v281
  %v284 = vadd.f32 %v261, %v282
  %v285 = vadd.f32 %v262, %v282
  %v286 = vadd.f32 %v263, %v282
  %v287 = vadd.f32 %v264, %v282
  %v288 = vadd.f32 %v265, %v282
  %v289 = vadd.f32 %v266, %v282
  %v290 = vadd.f32 %v267, %v282
  %v291 = vadd.f32 %v268, %v282
  %v292 = vadd.f32 %v269, %v282
  %v293 = vadd.f32 %v270, %v282
  %v294 = vadd.f32 %v271, %v282
  %v295 = vadd.f32 %v272, %v282
  %v296 = vadd.f32 %v273, %v282
  %v297 = vadd.f32 %v274, %v282
  %v298 = vadd.f32 %v275, %v282
  %v299 = vadd.f32 %v276, %v282
  %300 = vst [vmem:[%s4] sm:$0xff] %v284
  %301 = vst [vmem:[%s4 + $0x8] sm:$0xff] %v285
  %302 = vst [vmem:[%s4 + $0x10] sm:$0xff] %v286
  %303 = vst [vmem:[%s4 + $0x18] sm:$0xff] %v287
  %304 = vst [vmem:[%s4 + $0x20] sm:$0xff] %v288
  %305 = vst [vmem:[%s4 + $0x28] sm:$0xff] %v289
  %306 = vst [vmem:[%s4 + $0x30] sm:$0xff] %v290
  %307 = vst [vmem:[%s4 + $0x38] sm:$0xff] %v291
  %308 = vst [vmem:[%s4 + $0x40] sm:$0xff] %v292
  %309 = vst [vmem:[%s4 + $0x48] sm:$0xff] %v293
  %310 = vst [vmem:[%s4 + $0x50] sm:$0xff] %v294
  %311 = vst [vmem:[%s4 + $0x58] sm:$0xff] %v295
  %312 = vst [vmem:[%s4 + $0x60] sm:$0xff] %v296
  %313 = vst [vmem:[%s4 + $0x68] sm:$0xff] %v297
  %314 = vst [vmem:[%s4 + $0x70] sm:$0xff] %v298
  %315 = vst [vmem:[%s4 + $0x78] sm:$0xff] %v299
  %v316 = vpack.c.bf16 %v285, %v284
  %v317 = vpack.c.bf16 %v287, %v286
  %v318 = vpack.c.bf16 %v289, %v288
  %v319 = vpack.c.bf16 %v291, %v290
  %v320 = vpack.c.bf16 %v293, %v292
  %v321 = vpack.c.bf16 %v295, %v294
  %v322 = vpack.c.bf16 %v297, %v296
  %v323 = vpack.c.bf16 %v299, %v298
  %v332 = vunpack.c.l.b16 %v316
  %v333 = vunpack.c.h.b16 %v316
  %v334 = vunpack.c.l.b16 %v317
  %v335 = vunpack.c.h.b16 %v317
  %v336 = vunpack.c.l.b16 %v318
  %v337 = vunpack.c.h.b16 %v318
  %v338 = vunpack.c.l.b16 %v319
  %v339 = vunpack.c.h.b16 %v319
  %v340 = vunpack.c.l.b16 %v320
  %v341 = vunpack.c.h.b16 %v320
  %v342 = vunpack.c.l.b16 %v321
  %v343 = vunpack.c.h.b16 %v321
  %v344 = vunpack.c.l.b16 %v322
  %v345 = vunpack.c.h.b16 %v322
  %v346 = vunpack.c.l.b16 %v323
  %v347 = vunpack.c.h.b16 %v323
  %v348 = vpack.c.b16 %v332, %v332
  %v349 = vpack.c.b16 %v333, %v333
  %v350 = vpack.c.b16 %v334, %v334
  %v351 = vpack.c.b16 %v335, %v335
  %v352 = vpack.c.b16 %v336, %v336
  %v353 = vpack.c.b16 %v337, %v337
  %v354 = vpack.c.b16 %v338, %v338
  %v355 = vpack.c.b16 %v339, %v339
  %v356 = vpack.c.b16 %v340, %v340
  %v357 = vpack.c.b16 %v341, %v341
  %v358 = vpack.c.b16 %v342, %v342
  %v359 = vpack.c.b16 %v343, %v343
  %v360 = vpack.c.b16 %v344, %v344
  %v361 = vpack.c.b16 %v345, %v345
  %v362 = vpack.c.b16 %v346, %v346
  %v363 = vpack.c.b16 %v347, %v347
  %380 = vst [vmem:[%s5] sm:$0xf] %v348
  %381 = vst [vmem:[%s5 + $0x4] sm:$0xf] %v349
  %382 = vst [vmem:[%s5 + $0x8] sm:$0xf] %v350
  %383 = vst [vmem:[%s5 + $0xc] sm:$0xf] %v351
  %384 = vst [vmem:[%s5 + $0x10] sm:$0xf] %v352
  %385 = vst [vmem:[%s5 + $0x14] sm:$0xf] %v353
  %386 = vst [vmem:[%s5 + $0x18] sm:$0xf] %v354
  %387 = vst [vmem:[%s5 + $0x1c] sm:$0xf] %v355
  %388 = vst [vmem:[%s5 + $0x20] sm:$0xf] %v356
  %389 = vst [vmem:[%s5 + $0x24] sm:$0xf] %v357
  %390 = vst [vmem:[%s5 + $0x28] sm:$0xf] %v358
  %391 = vst [vmem:[%s5 + $0x2c] sm:$0xf] %v359
  %392 = vst [vmem:[%s5 + $0x30] sm:$0xf] %v360
  %393 = vst [vmem:[%s5 + $0x34] sm:$0xf] %v361
  %394 = vst [vmem:[%s5 + $0x38] sm:$0xf] %v362
  %395 = vst [vmem:[%s5 + $0x3c] sm:$0xf] %v363
  // Predicated region
  $region18: #{lightgcn_forward.9} parent=0 // pred_check
    _
  $region19: #{lightgcn_forward.9} parent=0 // pred_check_branch
    %397 = sbr.rel (0) target = $region21
  $region20: #{lightgcn_forward.9} parent=0 // pred_region
    _
  $region21: #{lightgcn_forward.9} parent=0 // pred_fallthru
    _
  // Predicated region
  $region22: #{lightgcn_forward.9} parent=0 // pred_check
    _
  $region23: #{lightgcn_forward.9} parent=0 // pred_check_branch
    %399 = sbr.rel (0) target = $region25
  $region24: #{lightgcn_forward.9} parent=0 // pred_region
    _
  $region25: #{lightgcn_forward.9} parent=0 // pred_fallthru
    _
  // Predicated region
  $region26: #{lightgcn_forward.9} parent=0 // pred_check
    _
  $region27: #{lightgcn_forward.9} parent=0 // pred_check_branch
    %401 = sbr.rel (0) target = $region29
  $region28: #{lightgcn_forward.9} parent=0 // pred_region
    _
  $region29: #{lightgcn_forward.9} parent=0 // pred_fallthru
    _
  // Predicated region
  $region30: #{lightgcn_forward.9} parent=0 // pred_check
    _
  $region31: #{lightgcn_forward.9} parent=0 // pred_check_branch
    %403 = sbr.rel (0) target = $region33
  $region32: #{lightgcn_forward.9} parent=0 // pred_region
    _
  $region33: #{lightgcn_forward.9} parent=0 // pred_fallthru
    _

</llo_original>
